<compile_context>
chip_gen: v7x
topology: tpu7x:2x2x1
jax: 0.10.0
libtpu: 0.0.40
codegen_flags: <defaults>
</compile_context>

<pallas_src>
import jax
import jax.numpy as jnp
from jax import lax
from jax.experimental import pallas as pl
from jax.experimental.pallas import tpu as pltpu


def _make_wavefront_lstm_kernel(T, Bp, H, layer_rows):
    """Build the fused stacked-LSTM kernel.

    layer_rows: per-layer (wih_row_offset, input_size, whh_row_offset) into the packed weight
    slab (offsets are multiples of 8, so in-kernel slices stay sublane-aligned).

    Kernel refs (all VMEM, no scratch):
      x_ref   (T*Bp, IN)    time-major input, batch padded to Bp, already flattened
      w_ref   (rows, 4H)    packed [wih_0; whh_0; wih_1; whh_1; ...], gate cols [i, f, o, g]
      b_ref   (L, 4H)       f32 combined biases (b_ih + b_hh), gate-reordered
      out_ref (Bp, H)       h_{T-1} of the last layer (the only HBM write)
    """
    L = len(layer_rows)

    def cell(gin, h_prev, c_prev, whh_l):
        gates = gin + jnp.dot(h_prev.astype(whh_l.dtype), whh_l,
                              preferred_element_type=jnp.float32)      # (Bp, 4H)
        # Gate columns were reordered to [i, f, o, g] in the wrapper: one sigmoid over the
        # first 3H lanes, one tanh over the last H.
        # TODO(synk): full-vreg sigmoid/tanh + lane mask + pltpu.roll would avoid the 32-lane
        #             partial slices; skipped (marginal at H=32, adds risk).
        sig = jax.nn.sigmoid(gates[:, :3 * H])
        g_gate = jnp.tanh(gates[:, 3 * H:])
        i_gate = sig[:, :H]
        f_gate = sig[:, H:2 * H]
        o_gate = sig[:, 2 * H:]
        c_new = f_gate * c_prev + i_gate * g_gate
        h_new = o_gate * jnp.tanh(c_new)
        return h_new, c_new

    def kernel(x_ref, w_ref, b_ref, out_ref):
        # Load weights once via static, sublane-aligned slices of the packed slab.
        b_all = b_ref[...]                                   # (L, 4H) f32
        wih, whh, bias = [], [], []
        for l, (wo, in_l, ho) in enumerate(layer_rows):
            wih.append(w_ref[wo:wo + in_l, :])               # (IN_l, 4H)
            whh.append(w_ref[ho:ho + H, :])                  # (H, 4H)
            bias.append(b_all[l:l + 1, :])                   # (1, 4H)

        # Hoist layer-0's input projection for ALL timesteps off the serial path:
        # one (T*Bp, IN) @ (IN, 4H) MXU matmul + bias.
        gx0 = jnp.dot(x_ref[...], wih[0], preferred_element_type=jnp.float32) + bias[0]

        h = [jnp.zeros((Bp, H), jnp.float32) for _ in range(L)]
        c = [jnp.zeros((Bp, H), jnp.float32) for _ in range(L)]

        # Wavefront: critical path = T + L - 1 cell steps instead of T * L.
        for s in range(T + L - 1):
            prev_h = list(h)   # values as of the end of wavefront step s-1
            prev_c = list(c)
            for l in range(L):
                t = s - l
                if t < 0 or t >= T:
                    continue
                if l == 0:
                    gin = gx0[t * Bp:(t + 1) * Bp, :]        # static, aligned slice
                else:
                    # Input projection of h_t^{l-1}, which became available at step s-1.
                    gin = jnp.dot(prev_h[l - 1].astype(wih[l].dtype), wih[l],
                                  preferred_element_type=jnp.float32) + bias[l]
                h[l], c[l] = cell(gin, prev_h[l], prev_c[l], whh[l])

        out_ref[...] = h[L - 1]

    return kernel


def _reorder_gate_blocks(p, H):
    """PyTorch packs gates as [i, f, g, o] along axis 0; reorder to [i, f, o, g]."""
    return jnp.concatenate([p[:H], p[H:2 * H], p[3 * H:], p[2 * H:3 * H]], axis=0)


def temporal_encoder_forward(x, params, matmul_dtype=jnp.bfloat16):
    """Equivalent of TemporalEncoder.forward (eval mode): last-timestep hidden of last layer.

    x: (B, T, input_size), batch_first like the PyTorch module.
    params: list of per-layer dicts with w_ih (4H, IN_l), w_hh (4H, H), b_ih (4H,), b_hh (4H,).
    matmul_dtype: MXU operand dtype (bf16 default = native MXU path on v5e/v6e/v7x); bias,
                  gate math and h/c state stay f32 regardless.
    Returns (B, hidden_size).
    """
    B, T, in0 = x.shape
    H = params[0]["w_hh"].shape[1]
    L = len(params)
    G = 4 * H
    Bp = max(8, ((B + 7) // 8) * 8)   # pad batch to a sublane multiple
    # NOTE: 4H=128 keeps the gate tile exactly one vreg wide; other H stay correct, just masked.

    # Time-major, batch padded, flattened to (T*Bp, IN) so the kernel never reshapes.
    x_tm = jnp.transpose(x, (1, 0, 2)).astype(jnp.float32)
    if Bp != B:
        x_tm = jnp.pad(x_tm, ((0, 0), (0, Bp - B), (0, 0)))
    x2d = x_tm.reshape(T * Bp, in0).astype(matmul_dtype)

    # Pack every layer's pre-transposed, gate-reordered weights into one lane-dense slab;
    # each block padded to a multiple of 8 rows so in-kernel slices stay sublane-aligned.
    blocks, layer_rows, biases = [], [], []
    row = 0

    def _append(mat):
        nonlocal row
        r = mat.shape[0]
        rp = ((r + 7) // 8) * 8
        if rp != r:
            mat = jnp.pad(mat, ((0, rp - r), (0, 0)))
        blocks.append(mat)
        off = row
        row += rp
        return off, r

    for layer in params:
        wih_t = _reorder_gate_blocks(jnp.asarray(layer["w_ih"], jnp.float32), H).T  # (IN_l, 4H)
        whh_t = _reorder_gate_blocks(jnp.asarray(layer["w_hh"], jnp.float32), H).T  # (H, 4H)
        b = _reorder_gate_blocks(
            jnp.asarray(layer["b_ih"] + layer["b_hh"], jnp.float32), H)
        wo, in_l = _append(wih_t)
        ho, _ = _append(whh_t)
        layer_rows.append((wo, in_l, ho))
        biases.append(b.reshape(1, G))

    w_slab = jnp.concatenate(blocks, axis=0).astype(matmul_dtype)   # (rows, 4H)
    b_slab = jnp.concatenate(biases, axis=0)                        # (L, 4H) f32

    kernel = _make_wavefront_lstm_kernel(T, Bp, H, layer_rows)

    out = pl.pallas_call(
        kernel,
        out_shape=jax.ShapeDtypeStruct((Bp, H), jnp.float32),
        in_specs=[pl.BlockSpec(memory_space=pltpu.MemorySpace.VMEM)] * 3,
        out_specs=pl.BlockSpec(memory_space=pltpu.MemorySpace.VMEM),
        # Tiny footprint at this shape; 32 MiB stays well under v7x's 64 MiB physical VMEM.
        compiler_params=pltpu.CompilerParams(vmem_limit_bytes=32 * 1024 * 1024),
    )(x2d, w_slab, b_slab)

    return out[:B]


def _reference_lstm(x, params):
    """Pure-JAX reference (lax.scan) matching PyTorch LSTM eval forward (f32, highest precision)."""
    x_tm = jnp.transpose(x, (1, 0, 2)).astype(jnp.float32)
    h_seq = x_tm
    for layer in params:
        w_ih, w_hh = layer["w_ih"], layer["w_hh"]
        b = layer["b_ih"] + layer["b_hh"]
        H = w_hh.shape[1]
        B = h_seq.shape[1]

        def step(carry, x_t, w_ih=w_ih, w_hh=w_hh, b=b, H=H):
            h, c = carry
            gates = (jnp.dot(x_t, w_ih.T, precision=lax.Precision.HIGHEST)
                     + jnp.dot(h, w_hh.T, precision=lax.Precision.HIGHEST) + b)
            i = jax.nn.sigmoid(gates[:, 0:H])
            f = jax.nn.sigmoid(gates[:, H:2 * H])
            g = jnp.tanh(gates[:, 2 * H:3 * H])
            o = jax.nn.sigmoid(gates[:, 3 * H:4 * H])
            c = f * c + i * g
            h = o * jnp.tanh(c)
            return (h, c), h

        init = (jnp.zeros((B, H), jnp.float32), jnp.zeros((B, H), jnp.float32))
        _, h_seq = lax.scan(step, init, h_seq)
    return h_seq[-1]


def init_params(key, input_size, hidden_size, num_layers):
    """Deterministic PyTorch-style init: U(-1/sqrt(H), 1/sqrt(H))."""
    bound = 1.0 / (hidden_size ** 0.5)
    params = []
    for layer in range(num_layers):
        in_sz = input_size if layer == 0 else hidden_size
        key, k1, k2, k3, k4 = jax.random.split(key, 5)
        params.append({
            "w_ih": jax.random.uniform(k1, (4 * hidden_size, in_sz),
                                       jnp.float32, -bound, bound),
            "w_hh": jax.random.uniform(k2, (4 * hidden_size, hidden_size),
                                       jnp.float32, -bound, bound),
            "b_ih": jax.random.uniform(k3, (4 * hidden_size,),
                                       jnp.float32, -bound, bound),
            "b_hh": jax.random.uniform(k4, (4 * hidden_size,),
                                       jnp.float32, -bound, bound),
        })
    return params


if __name__ == "__main__":
    # Shapes implied by the module: x is (batch, seq, input_size).
    B, T, INPUT_SIZE, HIDDEN_SIZE, NUM_LAYERS = 2, 8, 16, 32, 2

    key = jax.random.PRNGKey(0)
    key, kx = jax.random.split(key)
    x = jax.random.normal(kx, (B, T, INPUT_SIZE), jnp.float32)
    params = init_params(key, INPUT_SIZE, HIDDEN_SIZE, NUM_LAYERS)

    ref = jax.block_until_ready(_reference_lstm(x, params))

    # f32 MXU-operand path (multi-pass f32 matmul): tight tolerance vs. the f32 reference.
    out_f32 = jax.block_until_ready(
        temporal_encoder_forward(x, params, matmul_dtype=jnp.float32))
    assert out_f32.shape == (B, HIDDEN_SIZE), out_f32.shape
    err_f32 = float(jnp.max(jnp.abs(out_f32 - ref)))
    assert err_f32 < 5e-4, err_f32

    # Default bf16 MXU-operand path (native MXU on v5e/v6e/v7x): relaxed tolerance.
    out_bf16 = jax.block_until_ready(temporal_encoder_forward(x, params))
    assert out_bf16.shape == (B, HIDDEN_SIZE), out_bf16.shape
    err_bf16 = float(jnp.max(jnp.abs(out_bf16 - ref)))
    assert err_bf16 < 5e-2, err_bf16

    print("KERNEL_OK")
</pallas_src>

<mosaic_0001>
module attributes {stable_mosaic.version = 11 : i64} {
  func.func @kernel(%arg0: memref<64x16xf32, #tpu.memory_space<vmem>>, %arg1: memref<112x128xf32, #tpu.memory_space<vmem>>, %arg2: memref<2x128xf32, #tpu.memory_space<vmem>>, %arg3: memref<8x32xf32, #tpu.memory_space<vmem>>) attributes {dimension_semantics = [], scalar_prefetch = 0 : i64, scratch_operands = 0 : i64, tpu.core_type = #tpu.core_type<tc>} {
    %c0 = arith.constant 0 : index
    %c0_0 = arith.constant 0 : index
    %0 = vector.load %arg2[%c0, %c0_0] : memref<2x128xf32, #tpu.memory_space<vmem>>, vector<2x128xf32>
    %c0_1 = arith.constant 0 : index
    %c0_2 = arith.constant 0 : index
    %1 = vector.load %arg1[%c0_1, %c0_2] : memref<112x128xf32, #tpu.memory_space<vmem>>, vector<16x128xf32>
    %c16 = arith.constant 16 : index
    %c0_3 = arith.constant 0 : index
    %2 = vector.load %arg1[%c16, %c0_3] : memref<112x128xf32, #tpu.memory_space<vmem>>, vector<32x128xf32>
    %3 = vector.extract_strided_slice %0 {offsets = [0, 0], sizes = [1, 128], strides = [1, 1]} : vector<2x128xf32> to vector<1x128xf32>
    %c48 = arith.constant 48 : index
    %c0_4 = arith.constant 0 : index
    %4 = vector.load %arg1[%c48, %c0_4] : memref<112x128xf32, #tpu.memory_space<vmem>>, vector<32x128xf32>
    %c80 = arith.constant 80 : index
    %c0_5 = arith.constant 0 : index
    %5 = vector.load %arg1[%c80, %c0_5] : memref<112x128xf32, #tpu.memory_space<vmem>>, vector<32x128xf32>
    %6 = vector.extract_strided_slice %0 {offsets = [1, 0], sizes = [1, 128], strides = [1, 1]} : vector<2x128xf32> to vector<1x128xf32>
    %c0_6 = arith.constant 0 : index
    %c0_7 = arith.constant 0 : index
    %7 = vector.load %arg0[%c0_6, %c0_7] : memref<64x16xf32, #tpu.memory_space<vmem>>, vector<64x16xf32>
    %cst = arith.constant dense<0.000000e+00> : vector<64x128xf32>
    %8 = tpu.matmul %7, %1, %cst {dimension_numbers = #tpu.dot_dimension_numbers<[1], [0], [0], [1], [0, 0, 1, 1], [], []>} : vector<64x16xf32>, vector<16x128xf32>, vector<64x128xf32> -> vector<64x128xf32>
    %9 = vector.broadcast %3 : vector<1x128xf32> to vector<64x128xf32>
    %10 = arith.addf %8, %9 : vector<64x128xf32>
    %cst_8 = arith.constant 0.000000e+00 : f32
    %11 = vector.broadcast %cst_8 : f32 to vector<8x32xf32>
    %cst_9 = arith.constant 0.000000e+00 : f32
    %12 = vector.broadcast %cst_9 : f32 to vector<8x32xf32>
    %cst_10 = arith.constant 0.000000e+00 : f32
    %13 = vector.broadcast %cst_10 : f32 to vector<8x32xf32>
    %cst_11 = arith.constant 0.000000e+00 : f32
    %14 = vector.broadcast %cst_11 : f32 to vector<8x32xf32>
    %15 = vector.extract_strided_slice %10 {offsets = [0, 0], sizes = [8, 128], strides = [1, 1]} : vector<64x128xf32> to vector<8x128xf32>
    %cst_12 = arith.constant dense<0.000000e+00> : vector<8x128xf32>
    %16 = tpu.matmul %11, %2, %cst_12 {dimension_numbers = #tpu.dot_dimension_numbers<[1], [0], [0], [1], [0, 0, 1, 1], [], []>} : vector<8x32xf32>, vector<32x128xf32>, vector<8x128xf32> -> vector<8x128xf32>
    %17 = arith.addf %15, %16 : vector<8x128xf32>
    %18 = vector.extract_strided_slice %17 {offsets = [0, 0], sizes = [8, 96], strides = [1, 1]} : vector<8x128xf32> to vector<8x96xf32>
    %19 = arith.negf %18 : vector<8x96xf32>
    %20 = math.exp %19 : vector<8x96xf32>
    %cst_13 = arith.constant 1.000000e+00 : f32
    %21 = vector.broadcast %cst_13 : f32 to vector<8x96xf32>
    %22 = arith.addf %21, %20 : vector<8x96xf32>
    %23 = arith.divf %21, %22 : vector<8x96xf32>
    %24 = vector.extract_strided_slice %17 {offsets = [0, 96], sizes = [8, 32], strides = [1, 1]} : vector<8x128xf32> to vector<8x32xf32>
    %25 = math.tanh %24 : vector<8x32xf32>
    %26 = vector.extract_strided_slice %23 {offsets = [0, 0], sizes = [8, 32], strides = [1, 1]} : vector<8x96xf32> to vector<8x32xf32>
    %27 = vector.extract_strided_slice %23 {offsets = [0, 32], sizes = [8, 32], strides = [1, 1]} : vector<8x96xf32> to vector<8x32xf32>
    %28 = vector.extract_strided_slice %23 {offsets = [0, 64], sizes = [8, 32], strides = [1, 1]} : vector<8x96xf32> to vector<8x32xf32>
    %29 = arith.mulf %27, %13 : vector<8x32xf32>
    %30 = arith.mulf %26, %25 : vector<8x32xf32>
    %31 = arith.addf %29, %30 : vector<8x32xf32>
    %32 = math.tanh %31 : vector<8x32xf32>
    %33 = arith.mulf %28, %32 : vector<8x32xf32>
    %34 = vector.extract_strided_slice %10 {offsets = [8, 0], sizes = [8, 128], strides = [1, 1]} : vector<64x128xf32> to vector<8x128xf32>
    %cst_14 = arith.constant dense<0.000000e+00> : vector<8x128xf32>
    %35 = tpu.matmul %33, %2, %cst_14 {dimension_numbers = #tpu.dot_dimension_numbers<[1], [0], [0], [1], [0, 0, 1, 1], [], []>} : vector<8x32xf32>, vector<32x128xf32>, vector<8x128xf32> -> vector<8x128xf32>
    %36 = arith.addf %34, %35 : vector<8x128xf32>
    %37 = vector.extract_strided_slice %36 {offsets = [0, 0], sizes = [8, 96], strides = [1, 1]} : vector<8x128xf32> to vector<8x96xf32>
    %38 = arith.negf %37 : vector<8x96xf32>
    %39 = math.exp %38 : vector<8x96xf32>
    %cst_15 = arith.constant 1.000000e+00 : f32
    %40 = vector.broadcast %cst_15 : f32 to vector<8x96xf32>
    %41 = arith.addf %40, %39 : vector<8x96xf32>
    %42 = arith.divf %40, %41 : vector<8x96xf32>
    %43 = vector.extract_strided_slice %36 {offsets = [0, 96], sizes = [8, 32], strides = [1, 1]} : vector<8x128xf32> to vector<8x32xf32>
    %44 = math.tanh %43 : vector<8x32xf32>
    %45 = vector.extract_strided_slice %42 {offsets = [0, 0], sizes = [8, 32], strides = [1, 1]} : vector<8x96xf32> to vector<8x32xf32>
    %46 = vector.extract_strided_slice %42 {offsets = [0, 32], sizes = [8, 32], strides = [1, 1]} : vector<8x96xf32> to vector<8x32xf32>
    %47 = vector.extract_strided_slice %42 {offsets = [0, 64], sizes = [8, 32], strides = [1, 1]} : vector<8x96xf32> to vector<8x32xf32>
    %48 = arith.mulf %46, %31 : vector<8x32xf32>
    %49 = arith.mulf %45, %44 : vector<8x32xf32>
    %50 = arith.addf %48, %49 : vector<8x32xf32>
    %51 = math.tanh %50 : vector<8x32xf32>
    %52 = arith.mulf %47, %51 : vector<8x32xf32>
    %cst_16 = arith.constant dense<0.000000e+00> : vector<8x128xf32>
    %53 = tpu.matmul %33, %4, %cst_16 {dimension_numbers = #tpu.dot_dimension_numbers<[1], [0], [0], [1], [0, 0, 1, 1], [], []>} : vector<8x32xf32>, vector<32x128xf32>, vector<8x128xf32> -> vector<8x128xf32>
    %54 = vector.broadcast %6 : vector<1x128xf32> to vector<8x128xf32>
    %55 = arith.addf %53, %54 : vector<8x128xf32>
    %cst_17 = arith.constant dense<0.000000e+00> : vector<8x128xf32>
    %56 = tpu.matmul %12, %5, %cst_17 {dimension_numbers = #tpu.dot_dimension_numbers<[1], [0], [0], [1], [0, 0, 1, 1], [], []>} : vector<8x32xf32>, vector<32x128xf32>, vector<8x128xf32> -> vector<8x128xf32>
    %57 = arith.addf %55, %56 : vector<8x128xf32>
    %58 = vector.extract_strided_slice %57 {offsets = [0, 0], sizes = [8, 96], strides = [1, 1]} : vector<8x128xf32> to vector<8x96xf32>
    %59 = arith.negf %58 : vector<8x96xf32>
    %60 = math.exp %59 : vector<8x96xf32>
    %cst_18 = arith.constant 1.000000e+00 : f32
    %61 = vector.broadcast %cst_18 : f32 to vector<8x96xf32>
    %62 = arith.addf %61, %60 : vector<8x96xf32>
    %63 = arith.divf %61, %62 : vector<8x96xf32>
    %64 = vector.extract_strided_slice %57 {offsets = [0, 96], sizes = [8, 32], strides = [1, 1]} : vector<8x128xf32> to vector<8x32xf32>
    %65 = math.tanh %64 : vector<8x32xf32>
    %66 = vector.extract_strided_slice %63 {offsets = [0, 0], sizes = [8, 32], strides = [1, 1]} : vector<8x96xf32> to vector<8x32xf32>
    %67 = vector.extract_strided_slice %63 {offsets = [0, 32], sizes = [8, 32], strides = [1, 1]} : vector<8x96xf32> to vector<8x32xf32>
    %68 = vector.extract_strided_slice %63 {offsets = [0, 64], sizes = [8, 32], strides = [1, 1]} : vector<8x96xf32> to vector<8x32xf32>
    %69 = arith.mulf %67, %14 : vector<8x32xf32>
    %70 = arith.mulf %66, %65 : vector<8x32xf32>
    %71 = arith.addf %69, %70 : vector<8x32xf32>
    %72 = math.tanh %71 : vector<8x32xf32>
    %73 = arith.mulf %68, %72 : vector<8x32xf32>
    %74 = vector.extract_strided_slice %10 {offsets = [16, 0], sizes = [8, 128], strides = [1, 1]} : vector<64x128xf32> to vector<8x128xf32>
    %cst_19 = arith.constant dense<0.000000e+00> : vector<8x128xf32>
    %75 = tpu.matmul %52, %2, %cst_19 {dimension_numbers = #tpu.dot_dimension_numbers<[1], [0], [0], [1], [0, 0, 1, 1], [], []>} : vector<8x32xf32>, vector<32x128xf32>, vector<8x128xf32> -> vector<8x128xf32>
    %76 = arith.addf %74, %75 : vector<8x128xf32>
    %77 = vector.extract_strided_slice %76 {offsets = [0, 0], sizes = [8, 96], strides = [1, 1]} : vector<8x128xf32> to vector<8x96xf32>
    %78 = arith.negf %77 : vector<8x96xf32>
    %79 = math.exp %78 : vector<8x96xf32>
    %cst_20 = arith.constant 1.000000e+00 : f32
    %80 = vector.broadcast %cst_20 : f32 to vector<8x96xf32>
    %81 = arith.addf %80, %79 : vector<8x96xf32>
    %82 = arith.divf %80, %81 : vector<8x96xf32>
    %83 = vector.extract_strided_slice %76 {offsets = [0, 96], sizes = [8, 32], strides = [1, 1]} : vector<8x128xf32> to vector<8x32xf32>
    %84 = math.tanh %83 : vector<8x32xf32>
    %85 = vector.extract_strided_slice %82 {offsets = [0, 0], sizes = [8, 32], strides = [1, 1]} : vector<8x96xf32> to vector<8x32xf32>
    %86 = vector.extract_strided_slice %82 {offsets = [0, 32], sizes = [8, 32], strides = [1, 1]} : vector<8x96xf32> to vector<8x32xf32>
    %87 = vector.extract_strided_slice %82 {offsets = [0, 64], sizes = [8, 32], strides = [1, 1]} : vector<8x96xf32> to vector<8x32xf32>
    %88 = arith.mulf %86, %50 : vector<8x32xf32>
    %89 = arith.mulf %85, %84 : vector<8x32xf32>
    %90 = arith.addf %88, %89 : vector<8x32xf32>
    %91 = math.tanh %90 : vector<8x32xf32>
    %92 = arith.mulf %87, %91 : vector<8x32xf32>
    %cst_21 = arith.constant dense<0.000000e+00> : vector<8x128xf32>
    %93 = tpu.matmul %52, %4, %cst_21 {dimension_numbers = #tpu.dot_dimension_numbers<[1], [0], [0], [1], [0, 0, 1, 1], [], []>} : vector<8x32xf32>, vector<32x128xf32>, vector<8x128xf32> -> vector<8x128xf32>
    %94 = vector.broadcast %6 : vector<1x128xf32> to vector<8x128xf32>
    %95 = arith.addf %93, %94 : vector<8x128xf32>
    %cst_22 = arith.constant dense<0.000000e+00> : vector<8x128xf32>
    %96 = tpu.matmul %73, %5, %cst_22 {dimension_numbers = #tpu.dot_dimension_numbers<[1], [0], [0], [1], [0, 0, 1, 1], [], []>} : vector<8x32xf32>, vector<32x128xf32>, vector<8x128xf32> -> vector<8x128xf32>
    %97 = arith.addf %95, %96 : vector<8x128xf32>
    %98 = vector.extract_strided_slice %97 {offsets = [0, 0], sizes = [8, 96], strides = [1, 1]} : vector<8x128xf32> to vector<8x96xf32>
    %99 = arith.negf %98 : vector<8x96xf32>
    %100 = math.exp %99 : vector<8x96xf32>
    %cst_23 = arith.constant 1.000000e+00 : f32
    %101 = vector.broadcast %cst_23 : f32 to vector<8x96xf32>
    %102 = arith.addf %101, %100 : vector<8x96xf32>
    %103 = arith.divf %101, %102 : vector<8x96xf32>
    %104 = vector.extract_strided_slice %97 {offsets = [0, 96], sizes = [8, 32], strides = [1, 1]} : vector<8x128xf32> to vector<8x32xf32>
    %105 = math.tanh %104 : vector<8x32xf32>
    %106 = vector.extract_strided_slice %103 {offsets = [0, 0], sizes = [8, 32], strides = [1, 1]} : vector<8x96xf32> to vector<8x32xf32>
    %107 = vector.extract_strided_slice %103 {offsets = [0, 32], sizes = [8, 32], strides = [1, 1]} : vector<8x96xf32> to vector<8x32xf32>
    %108 = vector.extract_strided_slice %103 {offsets = [0, 64], sizes = [8, 32], strides = [1, 1]} : vector<8x96xf32> to vector<8x32xf32>
    %109 = arith.mulf %107, %71 : vector<8x32xf32>
    %110 = arith.mulf %106, %105 : vector<8x32xf32>
    %111 = arith.addf %109, %110 : vector<8x32xf32>
    %112 = math.tanh %111 : vector<8x32xf32>
    %113 = arith.mulf %108, %112 : vector<8x32xf32>
    %114 = vector.extract_strided_slice %10 {offsets = [24, 0], sizes = [8, 128], strides = [1, 1]} : vector<64x128xf32> to vector<8x128xf32>
    %cst_24 = arith.constant dense<0.000000e+00> : vector<8x128xf32>
    %115 = tpu.matmul %92, %2, %cst_24 {dimension_numbers = #tpu.dot_dimension_numbers<[1], [0], [0], [1], [0, 0, 1, 1], [], []>} : vector<8x32xf32>, vector<32x128xf32>, vector<8x128xf32> -> vector<8x128xf32>
    %116 = arith.addf %114, %115 : vector<8x128xf32>
    %117 = vector.extract_strided_slice %116 {offsets = [0, 0], sizes = [8, 96], strides = [1, 1]} : vector<8x128xf32> to vector<8x96xf32>
    %118 = arith.negf %117 : vector<8x96xf32>
    %119 = math.exp %118 : vector<8x96xf32>
    %cst_25 = arith.constant 1.000000e+00 : f32
    %120 = vector.broadcast %cst_25 : f32 to vector<8x96xf32>
    %121 = arith.addf %120, %119 : vector<8x96xf32>
    %122 = arith.divf %120, %121 : vector<8x96xf32>
    %123 = vector.extract_strided_slice %116 {offsets = [0, 96], sizes = [8, 32], strides = [1, 1]} : vector<8x128xf32> to vector<8x32xf32>
    %124 = math.tanh %123 : vector<8x32xf32>
    %125 = vector.extract_strided_slice %122 {offsets = [0, 0], sizes = [8, 32], strides = [1, 1]} : vector<8x96xf32> to vector<8x32xf32>
    %126 = vector.extract_strided_slice %122 {offsets = [0, 32], sizes = [8, 32], strides = [1, 1]} : vector<8x96xf32> to vector<8x32xf32>
    %127 = vector.extract_strided_slice %122 {offsets = [0, 64], sizes = [8, 32], strides = [1, 1]} : vector<8x96xf32> to vector<8x32xf32>
    %128 = arith.mulf %126, %90 : vector<8x32xf32>
    %129 = arith.mulf %125, %124 : vector<8x32xf32>
    %130 = arith.addf %128, %129 : vector<8x32xf32>
    %131 = math.tanh %130 : vector<8x32xf32>
    %132 = arith.mulf %127, %131 : vector<8x32xf32>
    %cst_26 = arith.constant dense<0.000000e+00> : vector<8x128xf32>
    %133 = tpu.matmul %92, %4, %cst_26 {dimension_numbers = #tpu.dot_dimension_numbers<[1], [0], [0], [1], [0, 0, 1, 1], [], []>} : vector<8x32xf32>, vector<32x128xf32>, vector<8x128xf32> -> vector<8x128xf32>
    %134 = vector.broadcast %6 : vector<1x128xf32> to vector<8x128xf32>
    %135 = arith.addf %133, %134 : vector<8x128xf32>
    %cst_27 = arith.constant dense<0.000000e+00> : vector<8x128xf32>
    %136 = tpu.matmul %113, %5, %cst_27 {dimension_numbers = #tpu.dot_dimension_numbers<[1], [0], [0], [1], [0, 0, 1, 1], [], []>} : vector<8x32xf32>, vector<32x128xf32>, vector<8x128xf32> -> vector<8x128xf32>
    %137 = arith.addf %135, %136 : vector<8x128xf32>
    %138 = vector.extract_strided_slice %137 {offsets = [0, 0], sizes = [8, 96], strides = [1, 1]} : vector<8x128xf32> to vector<8x96xf32>
    %139 = arith.negf %138 : vector<8x96xf32>
    %140 = math.exp %139 : vector<8x96xf32>
    %cst_28 = arith.constant 1.000000e+00 : f32
    %141 = vector.broadcast %cst_28 : f32 to vector<8x96xf32>
    %142 = arith.addf %141, %140 : vector<8x96xf32>
    %143 = arith.divf %141, %142 : vector<8x96xf32>
    %144 = vector.extract_strided_slice %137 {offsets = [0, 96], sizes = [8, 32], strides = [1, 1]} : vector<8x128xf32> to vector<8x32xf32>
    %145 = math.tanh %144 : vector<8x32xf32>
    %146 = vector.extract_strided_slice %143 {offsets = [0, 0], sizes = [8, 32], strides = [1, 1]} : vector<8x96xf32> to vector<8x32xf32>
    %147 = vector.extract_strided_slice %143 {offsets = [0, 32], sizes = [8, 32], strides = [1, 1]} : vector<8x96xf32> to vector<8x32xf32>
    %148 = vector.extract_strided_slice %143 {offsets = [0, 64], sizes = [8, 32], strides = [1, 1]} : vector<8x96xf32> to vector<8x32xf32>
    %149 = arith.mulf %147, %111 : vector<8x32xf32>
    %150 = arith.mulf %146, %145 : vector<8x32xf32>
    %151 = arith.addf %149, %150 : vector<8x32xf32>
    %152 = math.tanh %151 : vector<8x32xf32>
    %153 = arith.mulf %148, %152 : vector<8x32xf32>
    %154 = vector.extract_strided_slice %10 {offsets = [32, 0], sizes = [8, 128], strides = [1, 1]} : vector<64x128xf32> to vector<8x128xf32>
    %cst_29 = arith.constant dense<0.000000e+00> : vector<8x128xf32>
    %155 = tpu.matmul %132, %2, %cst_29 {dimension_numbers = #tpu.dot_dimension_numbers<[1], [0], [0], [1], [0, 0, 1, 1], [], []>} : vector<8x32xf32>, vector<32x128xf32>, vector<8x128xf32> -> vector<8x128xf32>
    %156 = arith.addf %154, %155 : vector<8x128xf32>
    %157 = vector.extract_strided_slice %156 {offsets = [0, 0], sizes = [8, 96], strides = [1, 1]} : vector<8x128xf32> to vector<8x96xf32>
    %158 = arith.negf %157 : vector<8x96xf32>
    %159 = math.exp %158 : vector<8x96xf32>
    %cst_30 = arith.constant 1.000000e+00 : f32
    %160 = vector.broadcast %cst_30 : f32 to vector<8x96xf32>
    %161 = arith.addf %160, %159 : vector<8x96xf32>
    %162 = arith.divf %160, %161 : vector<8x96xf32>
    %163 = vector.extract_strided_slice %156 {offsets = [0, 96], sizes = [8, 32], strides = [1, 1]} : vector<8x128xf32> to vector<8x32xf32>
    %164 = math.tanh %163 : vector<8x32xf32>
    %165 = vector.extract_strided_slice %162 {offsets = [0, 0], sizes = [8, 32], strides = [1, 1]} : vector<8x96xf32> to vector<8x32xf32>
    %166 = vector.extract_strided_slice %162 {offsets = [0, 32], sizes = [8, 32], strides = [1, 1]} : vector<8x96xf32> to vector<8x32xf32>
    %167 = vector.extract_strided_slice %162 {offsets = [0, 64], sizes = [8, 32], strides = [1, 1]} : vector<8x96xf32> to vector<8x32xf32>
    %168 = arith.mulf %166, %130 : vector<8x32xf32>
    %169 = arith.mulf %165, %164 : vector<8x32xf32>
    %170 = arith.addf %168, %169 : vector<8x32xf32>
    %171 = math.tanh %170 : vector<8x32xf32>
    %172 = arith.mulf %167, %171 : vector<8x32xf32>
    %cst_31 = arith.constant dense<0.000000e+00> : vector<8x128xf32>
    %173 = tpu.matmul %132, %4, %cst_31 {dimension_numbers = #tpu.dot_dimension_numbers<[1], [0], [0], [1], [0, 0, 1, 1], [], []>} : vector<8x32xf32>, vector<32x128xf32>, vector<8x128xf32> -> vector<8x128xf32>
    %174 = vector.broadcast %6 : vector<1x128xf32> to vector<8x128xf32>
    %175 = arith.addf %173, %174 : vector<8x128xf32>
    %cst_32 = arith.constant dense<0.000000e+00> : vector<8x128xf32>
    %176 = tpu.matmul %153, %5, %cst_32 {dimension_numbers = #tpu.dot_dimension_numbers<[1], [0], [0], [1], [0, 0, 1, 1], [], []>} : vector<8x32xf32>, vector<32x128xf32>, vector<8x128xf32> -> vector<8x128xf32>
    %177 = arith.addf %175, %176 : vector<8x128xf32>
    %178 = vector.extract_strided_slice %177 {offsets = [0, 0], sizes = [8, 96], strides = [1, 1]} : vector<8x128xf32> to vector<8x96xf32>
    %179 = arith.negf %178 : vector<8x96xf32>
    %180 = math.exp %179 : vector<8x96xf32>
    %cst_33 = arith.constant 1.000000e+00 : f32
    %181 = vector.broadcast %cst_33 : f32 to vector<8x96xf32>
    %182 = arith.addf %181, %180 : vector<8x96xf32>
    %183 = arith.divf %181, %182 : vector<8x96xf32>
    %184 = vector.extract_strided_slice %177 {offsets = [0, 96], sizes = [8, 32], strides = [1, 1]} : vector<8x128xf32> to vector<8x32xf32>
    %185 = math.tanh %184 : vector<8x32xf32>
    %186 = vector.extract_strided_slice %183 {offsets = [0, 0], sizes = [8, 32], strides = [1, 1]} : vector<8x96xf32> to vector<8x32xf32>
    %187 = vector.extract_strided_slice %183 {offsets = [0, 32], sizes = [8, 32], strides = [1, 1]} : vector<8x96xf32> to vector<8x32xf32>
    %188 = vector.extract_strided_slice %183 {offsets = [0, 64], sizes = [8, 32], strides = [1, 1]} : vector<8x96xf32> to vector<8x32xf32>
    %189 = arith.mulf %187, %151 : vector<8x32xf32>
    %190 = arith.mulf %186, %185 : vector<8x32xf32>
    %191 = arith.addf %189, %190 : vector<8x32xf32>
    %192 = math.tanh %191 : vector<8x32xf32>
    %193 = arith.mulf %188, %192 : vector<8x32xf32>
    %194 = vector.extract_strided_slice %10 {offsets = [40, 0], sizes = [8, 128], strides = [1, 1]} : vector<64x128xf32> to vector<8x128xf32>
    %cst_34 = arith.constant dense<0.000000e+00> : vector<8x128xf32>
    %195 = tpu.matmul %172, %2, %cst_34 {dimension_numbers = #tpu.dot_dimension_numbers<[1], [0], [0], [1], [0, 0, 1, 1], [], []>} : vector<8x32xf32>, vector<32x128xf32>, vector<8x128xf32> -> vector<8x128xf32>
    %196 = arith.addf %194, %195 : vector<8x128xf32>
    %197 = vector.extract_strided_slice %196 {offsets = [0, 0], sizes = [8, 96], strides = [1, 1]} : vector<8x128xf32> to vector<8x96xf32>
    %198 = arith.negf %197 : vector<8x96xf32>
    %199 = math.exp %198 : vector<8x96xf32>
    %cst_35 = arith.constant 1.000000e+00 : f32
    %200 = vector.broadcast %cst_35 : f32 to vector<8x96xf32>
    %201 = arith.addf %200, %199 : vector<8x96xf32>
    %202 = arith.divf %200, %201 : vector<8x96xf32>
    %203 = vector.extract_strided_slice %196 {offsets = [0, 96], sizes = [8, 32], strides = [1, 1]} : vector<8x128xf32> to vector<8x32xf32>
    %204 = math.tanh %203 : vector<8x32xf32>
    %205 = vector.extract_strided_slice %202 {offsets = [0, 0], sizes = [8, 32], strides = [1, 1]} : vector<8x96xf32> to vector<8x32xf32>
    %206 = vector.extract_strided_slice %202 {offsets = [0, 32], sizes = [8, 32], strides = [1, 1]} : vector<8x96xf32> to vector<8x32xf32>
    %207 = vector.extract_strided_slice %202 {offsets = [0, 64], sizes = [8, 32], strides = [1, 1]} : vector<8x96xf32> to vector<8x32xf32>
    %208 = arith.mulf %206, %170 : vector<8x32xf32>
    %209 = arith.mulf %205, %204 : vector<8x32xf32>
    %210 = arith.addf %208, %209 : vector<8x32xf32>
    %211 = math.tanh %210 : vector<8x32xf32>
    %212 = arith.mulf %207, %211 : vector<8x32xf32>
    %cst_36 = arith.constant dense<0.000000e+00> : vector<8x128xf32>
    %213 = tpu.matmul %172, %4, %cst_36 {dimension_numbers = #tpu.dot_dimension_numbers<[1], [0], [0], [1], [0, 0, 1, 1], [], []>} : vector<8x32xf32>, vector<32x128xf32>, vector<8x128xf32> -> vector<8x128xf32>
    %214 = vector.broadcast %6 : vector<1x128xf32> to vector<8x128xf32>
    %215 = arith.addf %213, %214 : vector<8x128xf32>
    %cst_37 = arith.constant dense<0.000000e+00> : vector<8x128xf32>
    %216 = tpu.matmul %193, %5, %cst_37 {dimension_numbers = #tpu.dot_dimension_numbers<[1], [0], [0], [1], [0, 0, 1, 1], [], []>} : vector<8x32xf32>, vector<32x128xf32>, vector<8x128xf32> -> vector<8x128xf32>
    %217 = arith.addf %215, %216 : vector<8x128xf32>
    %218 = vector.extract_strided_slice %217 {offsets = [0, 0], sizes = [8, 96], strides = [1, 1]} : vector<8x128xf32> to vector<8x96xf32>
    %219 = arith.negf %218 : vector<8x96xf32>
    %220 = math.exp %219 : vector<8x96xf32>
    %cst_38 = arith.constant 1.000000e+00 : f32
    %221 = vector.broadcast %cst_38 : f32 to vector<8x96xf32>
    %222 = arith.addf %221, %220 : vector<8x96xf32>
    %223 = arith.divf %221, %222 : vector<8x96xf32>
    %224 = vector.extract_strided_slice %217 {offsets = [0, 96], sizes = [8, 32], strides = [1, 1]} : vector<8x128xf32> to vector<8x32xf32>
    %225 = math.tanh %224 : vector<8x32xf32>
    %226 = vector.extract_strided_slice %223 {offsets = [0, 0], sizes = [8, 32], strides = [1, 1]} : vector<8x96xf32> to vector<8x32xf32>
    %227 = vector.extract_strided_slice %223 {offsets = [0, 32], sizes = [8, 32], strides = [1, 1]} : vector<8x96xf32> to vector<8x32xf32>
    %228 = vector.extract_strided_slice %223 {offsets = [0, 64], sizes = [8, 32], strides = [1, 1]} : vector<8x96xf32> to vector<8x32xf32>
    %229 = arith.mulf %227, %191 : vector<8x32xf32>
    %230 = arith.mulf %226, %225 : vector<8x32xf32>
    %231 = arith.addf %229, %230 : vector<8x32xf32>
    %232 = math.tanh %231 : vector<8x32xf32>
    %233 = arith.mulf %228, %232 : vector<8x32xf32>
    %234 = vector.extract_strided_slice %10 {offsets = [48, 0], sizes = [8, 128], strides = [1, 1]} : vector<64x128xf32> to vector<8x128xf32>
    %cst_39 = arith.constant dense<0.000000e+00> : vector<8x128xf32>
    %235 = tpu.matmul %212, %2, %cst_39 {dimension_numbers = #tpu.dot_dimension_numbers<[1], [0], [0], [1], [0, 0, 1, 1], [], []>} : vector<8x32xf32>, vector<32x128xf32>, vector<8x128xf32> -> vector<8x128xf32>
    %236 = arith.addf %234, %235 : vector<8x128xf32>
    %237 = vector.extract_strided_slice %236 {offsets = [0, 0], sizes = [8, 96], strides = [1, 1]} : vector<8x128xf32> to vector<8x96xf32>
    %238 = arith.negf %237 : vector<8x96xf32>
    %239 = math.exp %238 : vector<8x96xf32>
    %cst_40 = arith.constant 1.000000e+00 : f32
    %240 = vector.broadcast %cst_40 : f32 to vector<8x96xf32>
    %241 = arith.addf %240, %239 : vector<8x96xf32>
    %242 = arith.divf %240, %241 : vector<8x96xf32>
    %243 = vector.extract_strided_slice %236 {offsets = [0, 96], sizes = [8, 32], strides = [1, 1]} : vector<8x128xf32> to vector<8x32xf32>
    %244 = math.tanh %243 : vector<8x32xf32>
    %245 = vector.extract_strided_slice %242 {offsets = [0, 0], sizes = [8, 32], strides = [1, 1]} : vector<8x96xf32> to vector<8x32xf32>
    %246 = vector.extract_strided_slice %242 {offsets = [0, 32], sizes = [8, 32], strides = [1, 1]} : vector<8x96xf32> to vector<8x32xf32>
    %247 = vector.extract_strided_slice %242 {offsets = [0, 64], sizes = [8, 32], strides = [1, 1]} : vector<8x96xf32> to vector<8x32xf32>
    %248 = arith.mulf %246, %210 : vector<8x32xf32>
    %249 = arith.mulf %245, %244 : vector<8x32xf32>
    %250 = arith.addf %248, %249 : vector<8x32xf32>
    %251 = math.tanh %250 : vector<8x32xf32>
    %252 = arith.mulf %247, %251 : vector<8x32xf32>
    %cst_41 = arith.constant dense<0.000000e+00> : vector<8x128xf32>
    %253 = tpu.matmul %212, %4, %cst_41 {dimension_numbers = #tpu.dot_dimension_numbers<[1], [0], [0], [1], [0, 0, 1, 1], [], []>} : vector<8x32xf32>, vector<32x128xf32>, vector<8x128xf32> -> vector<8x128xf32>
    %254 = vector.broadcast %6 : vector<1x128xf32> to vector<8x128xf32>
    %255 = arith.addf %253, %254 : vector<8x128xf32>
    %cst_42 = arith.constant dense<0.000000e+00> : vector<8x128xf32>
    %256 = tpu.matmul %233, %5, %cst_42 {dimension_numbers = #tpu.dot_dimension_numbers<[1], [0], [0], [1], [0, 0, 1, 1], [], []>} : vector<8x32xf32>, vector<32x128xf32>, vector<8x128xf32> -> vector<8x128xf32>
    %257 = arith.addf %255, %256 : vector<8x128xf32>
    %258 = vector.extract_strided_slice %257 {offsets = [0, 0], sizes = [8, 96], strides = [1, 1]} : vector<8x128xf32> to vector<8x96xf32>
    %259 = arith.negf %258 : vector<8x96xf32>
    %260 = math.exp %259 : vector<8x96xf32>
    %cst_43 = arith.constant 1.000000e+00 : f32
    %261 = vector.broadcast %cst_43 : f32 to vector<8x96xf32>
    %262 = arith.addf %261, %260 : vector<8x96xf32>
    %263 = arith.divf %261, %262 : vector<8x96xf32>
    %264 = vector.extract_strided_slice %257 {offsets = [0, 96], sizes = [8, 32], strides = [1, 1]} : vector<8x128xf32> to vector<8x32xf32>
    %265 = math.tanh %264 : vector<8x32xf32>
    %266 = vector.extract_strided_slice %263 {offsets = [0, 0], sizes = [8, 32], strides = [1, 1]} : vector<8x96xf32> to vector<8x32xf32>
    %267 = vector.extract_strided_slice %263 {offsets = [0, 32], sizes = [8, 32], strides = [1, 1]} : vector<8x96xf32> to vector<8x32xf32>
    %268 = vector.extract_strided_slice %263 {offsets = [0, 64], sizes = [8, 32], strides = [1, 1]} : vector<8x96xf32> to vector<8x32xf32>
    %269 = arith.mulf %267, %231 : vector<8x32xf32>
    %270 = arith.mulf %266, %265 : vector<8x32xf32>
    %271 = arith.addf %269, %270 : vector<8x32xf32>
    %272 = math.tanh %271 : vector<8x32xf32>
    %273 = arith.mulf %268, %272 : vector<8x32xf32>
    %274 = vector.extract_strided_slice %10 {offsets = [56, 0], sizes = [8, 128], strides = [1, 1]} : vector<64x128xf32> to vector<8x128xf32>
    %cst_44 = arith.constant dense<0.000000e+00> : vector<8x128xf32>
    %275 = tpu.matmul %252, %2, %cst_44 {dimension_numbers = #tpu.dot_dimension_numbers<[1], [0], [0], [1], [0, 0, 1, 1], [], []>} : vector<8x32xf32>, vector<32x128xf32>, vector<8x128xf32> -> vector<8x128xf32>
    %276 = arith.addf %274, %275 : vector<8x128xf32>
    %277 = vector.extract_strided_slice %276 {offsets = [0, 0], sizes = [8, 96], strides = [1, 1]} : vector<8x128xf32> to vector<8x96xf32>
    %278 = arith.negf %277 : vector<8x96xf32>
    %279 = math.exp %278 : vector<8x96xf32>
    %cst_45 = arith.constant 1.000000e+00 : f32
    %280 = vector.broadcast %cst_45 : f32 to vector<8x96xf32>
    %281 = arith.addf %280, %279 : vector<8x96xf32>
    %282 = arith.divf %280, %281 : vector<8x96xf32>
    %283 = vector.extract_strided_slice %276 {offsets = [0, 96], sizes = [8, 32], strides = [1, 1]} : vector<8x128xf32> to vector<8x32xf32>
    %284 = math.tanh %283 : vector<8x32xf32>
    %285 = vector.extract_strided_slice %282 {offsets = [0, 0], sizes = [8, 32], strides = [1, 1]} : vector<8x96xf32> to vector<8x32xf32>
    %286 = vector.extract_strided_slice %282 {offsets = [0, 32], sizes = [8, 32], strides = [1, 1]} : vector<8x96xf32> to vector<8x32xf32>
    %287 = vector.extract_strided_slice %282 {offsets = [0, 64], sizes = [8, 32], strides = [1, 1]} : vector<8x96xf32> to vector<8x32xf32>
    %288 = arith.mulf %286, %250 : vector<8x32xf32>
    %289 = arith.mulf %285, %284 : vector<8x32xf32>
    %290 = arith.addf %288, %289 : vector<8x32xf32>
    %291 = math.tanh %290 : vector<8x32xf32>
    %292 = arith.mulf %287, %291 : vector<8x32xf32>
    %cst_46 = arith.constant dense<0.000000e+00> : vector<8x128xf32>
    %293 = tpu.matmul %252, %4, %cst_46 {dimension_numbers = #tpu.dot_dimension_numbers<[1], [0], [0], [1], [0, 0, 1, 1], [], []>} : vector<8x32xf32>, vector<32x128xf32>, vector<8x128xf32> -> vector<8x128xf32>
    %294 = vector.broadcast %6 : vector<1x128xf32> to vector<8x128xf32>
    %295 = arith.addf %293, %294 : vector<8x128xf32>
    %cst_47 = arith.constant dense<0.000000e+00> : vector<8x128xf32>
    %296 = tpu.matmul %273, %5, %cst_47 {dimension_numbers = #tpu.dot_dimension_numbers<[1], [0], [0], [1], [0, 0, 1, 1], [], []>} : vector<8x32xf32>, vector<32x128xf32>, vector<8x128xf32> -> vector<8x128xf32>
    %297 = arith.addf %295, %296 : vector<8x128xf32>
    %298 = vector.extract_strided_slice %297 {offsets = [0, 0], sizes = [8, 96], strides = [1, 1]} : vector<8x128xf32> to vector<8x96xf32>
    %299 = arith.negf %298 : vector<8x96xf32>
    %300 = math.exp %299 : vector<8x96xf32>
    %cst_48 = arith.constant 1.000000e+00 : f32
    %301 = vector.broadcast %cst_48 : f32 to vector<8x96xf32>
    %302 = arith.addf %301, %300 : vector<8x96xf32>
    %303 = arith.divf %301, %302 : vector<8x96xf32>
    %304 = vector.extract_strided_slice %297 {offsets = [0, 96], sizes = [8, 32], strides = [1, 1]} : vector<8x128xf32> to vector<8x32xf32>
    %305 = math.tanh %304 : vector<8x32xf32>
    %306 = vector.extract_strided_slice %303 {offsets = [0, 0], sizes = [8, 32], strides = [1, 1]} : vector<8x96xf32> to vector<8x32xf32>
    %307 = vector.extract_strided_slice %303 {offsets = [0, 32], sizes = [8, 32], strides = [1, 1]} : vector<8x96xf32> to vector<8x32xf32>
    %308 = vector.extract_strided_slice %303 {offsets = [0, 64], sizes = [8, 32], strides = [1, 1]} : vector<8x96xf32> to vector<8x32xf32>
    %309 = arith.mulf %307, %271 : vector<8x32xf32>
    %310 = arith.mulf %306, %305 : vector<8x32xf32>
    %311 = arith.addf %309, %310 : vector<8x32xf32>
    %312 = math.tanh %311 : vector<8x32xf32>
    %313 = arith.mulf %308, %312 : vector<8x32xf32>
    %cst_49 = arith.constant dense<0.000000e+00> : vector<8x128xf32>
    %314 = tpu.matmul %292, %4, %cst_49 {dimension_numbers = #tpu.dot_dimension_numbers<[1], [0], [0], [1], [0, 0, 1, 1], [], []>} : vector<8x32xf32>, vector<32x128xf32>, vector<8x128xf32> -> vector<8x128xf32>
    %315 = vector.broadcast %6 : vector<1x128xf32> to vector<8x128xf32>
    %316 = arith.addf %314, %315 : vector<8x128xf32>
    %cst_50 = arith.constant dense<0.000000e+00> : vector<8x128xf32>
    %317 = tpu.matmul %313, %5, %cst_50 {dimension_numbers = #tpu.dot_dimension_numbers<[1], [0], [0], [1], [0, 0, 1, 1], [], []>} : vector<8x32xf32>, vector<32x128xf32>, vector<8x128xf32> -> vector<8x128xf32>
    %318 = arith.addf %316, %317 : vector<8x128xf32>
    %319 = vector.extract_strided_slice %318 {offsets = [0, 0], sizes = [8, 96], strides = [1, 1]} : vector<8x128xf32> to vector<8x96xf32>
    %320 = arith.negf %319 : vector<8x96xf32>
    %321 = math.exp %320 : vector<8x96xf32>
    %cst_51 = arith.constant 1.000000e+00 : f32
    %322 = vector.broadcast %cst_51 : f32 to vector<8x96xf32>
    %323 = arith.addf %322, %321 : vector<8x96xf32>
    %324 = arith.divf %322, %323 : vector<8x96xf32>
    %325 = vector.extract_strided_slice %318 {offsets = [0, 96], sizes = [8, 32], strides = [1, 1]} : vector<8x128xf32> to vector<8x32xf32>
    %326 = math.tanh %325 : vector<8x32xf32>
    %327 = vector.extract_strided_slice %324 {offsets = [0, 0], sizes = [8, 32], strides = [1, 1]} : vector<8x96xf32> to vector<8x32xf32>
    %328 = vector.extract_strided_slice %324 {offsets = [0, 32], sizes = [8, 32], strides = [1, 1]} : vector<8x96xf32> to vector<8x32xf32>
    %329 = vector.extract_strided_slice %324 {offsets = [0, 64], sizes = [8, 32], strides = [1, 1]} : vector<8x96xf32> to vector<8x32xf32>
    %330 = arith.mulf %328, %311 : vector<8x32xf32>
    %331 = arith.mulf %327, %326 : vector<8x32xf32>
    %332 = arith.addf %330, %331 : vector<8x32xf32>
    %333 = math.tanh %332 : vector<8x32xf32>
    %334 = arith.mulf %329, %333 : vector<8x32xf32>
    %c0_52 = arith.constant 0 : index
    %c0_53 = arith.constant 0 : index
    %335 = vector.load %arg3[%c0_52, %c0_53] : memref<8x32xf32, #tpu.memory_space<vmem>>, vector<8x32xf32>
    tpu.vector_store %arg3[%c0_52, %c0_53], %334 {strides = array<i32>} : memref<8x32xf32, #tpu.memory_space<vmem>>, vector<8x32xf32>,
    return
  }
}

</mosaic_0001>

<llo_original>
// kernel: tpu_custom_call.1
$region0: #{tpu_custom_call.1}
  #allocation0 [shape = 'u32[]', space=smem, size = 0x4, offset = 0x4, fixed_abs, tag = 'smem constant byte address 0x4 - core index']
  #allocation1 [shape = 'u32[144,128]{1,0:T(1,128)}', space=vmem, size = 0x12000, scoped, tag = 'internal scratch']
  %s0 = inlined_call_operand.vmem [shape: f32[64,16], index: 0, kind: input, shape index: {}]
  %s1 = inlined_call_operand.hbm [shape: f32[112,128], index: 1, kind: input, shape index: {}]
  %s2 = inlined_call_operand.vmem [shape: f32[2,128], index: 2, kind: input, shape index: {}]
  %s3 = inlined_call_operand.hbm [shape: f32[8,32], index: 3, kind: output, shape index: {}]
  %s4 = sld [smem:[#allocation0]]
  $region26: #{tpu_custom_call.1} parent=0
    _
  %s6 = ssub.s32 1, %s4
  %s7 = scalar_select 0, %s6, %s4
  $region1: #{tpu_custom_call.1} parent=0
    #allocation2 [shape = 'u8[57344]{0}', space=vmem, size = 0xe000, scoped, tag = 'input window, operand 1, single buffered']
    #allocation3 [shape = 's32[1]{0}', space=sflag, size = 0x4, scoped, tag = 'scoped memory for tpu_custom_call.1']
    #allocation4 [shape = 's32[1]{0}', space=sflag, size = 0x4, scoped, tag = 'scoped memory for tpu_custom_call.1']
    #allocation5 [shape = 'u8[4096]{0}', space=vmem, size = 0x1000, scoped, tag = 'output window, operand 0, single buffered']
    %8 = vsyncpa [#allocation3], 0
    %9 = vsyncpa [#allocation4], 0
    // Predicated region
    $region2: #{tpu_custom_call.1} parent=1 // pred_check
      _
    $region3: #{tpu_custom_call.1} parent=1 // pred_check_branch
      %11 = sbr.rel (0) target = $region5
    $region4: #{tpu_custom_call.1} parent=1 // pred_region
      _
    $region5: #{tpu_custom_call.1} parent=1 // pred_fallthru
      _
    // Predicated region
    $region6: #{tpu_custom_call.1} parent=1 // pred_check
      _
    $region7: #{tpu_custom_call.1} parent=1 // pred_check_branch
      %13 = sbr.rel (0) target = $region9
    $region8: #{tpu_custom_call.1} parent=1 // pred_region
      %s15 = ssub.s32 1792, 1792
      %16 = vsyncadd [#allocation3], %s15
      %s17 = sshll.u32 [#allocation2], 4
      %s18 = int_to_ptr.vmem [resolvable:$true] %s17
      %23 = dma.hbm_to_vmem [thread:$0]  %s1, 1792, %s18, [#allocation3], 128, 128, 8
    $region9: #{tpu_custom_call.1} parent=1 // pred_fallthru
      _
    // Predicated region
    $region10: #{tpu_custom_call.1} parent=1 // pred_check
      _
    $region11: #{tpu_custom_call.1} parent=1 // pred_check_branch
      %25 = sbr.rel (0) target = $region13
    $region12: #{tpu_custom_call.1} parent=1 // pred_region
      _
    $region13: #{tpu_custom_call.1} parent=1 // pred_fallthru
      _
    // Predicated region
    $region14: #{tpu_custom_call.1} parent=1 // pred_check
      _
    $region15: #{tpu_custom_call.1} parent=1 // pred_check_branch
      %27 = sbr.rel (0) target = $region17
    $region16: #{tpu_custom_call.1} parent=1 // pred_region
      %28 = dma.done [#allocation3], 1792
    $region17: #{tpu_custom_call.1} parent=1 // pred_fallthru
      _
    %v29 = vld [vmem:[%s2] sm:$0x3]
    %v30 = vld [vmem:[#allocation2] sm:$0xff]
    %v31 = vld [vmem:[#allocation2 + $0x8] sm:$0xff]
    %v32 = vld [vmem:[#allocation2 + $0x10] sm:$0xff]
    %v33 = vld [vmem:[#allocation2 + $0x18] sm:$0xff]
    %v34 = vld [vmem:[#allocation2 + $0x20] sm:$0xff]
    %v35 = vld [vmem:[#allocation2 + $0x28] sm:$0xff]
    %v36 = vld [vmem:[#allocation2 + $0x30] sm:$0xff]
    %v37 = vld [vmem:[#allocation2 + $0x38] sm:$0xff]
    %v38 = vld [vmem:[#allocation2 + $0x40] sm:$0xff]
    %v39 = vld [vmem:[#allocation2 + $0x48] sm:$0xff]
    %v40 = vld [vmem:[#allocation2 + $0x50] sm:$0xff]
    %v41 = vld [vmem:[#allocation2 + $0x58] sm:$0xff]
    %v42 = vld [vmem:[#allocation2 + $0x60] sm:$0xff]
    %v43 = vld [vmem:[#allocation2 + $0x68] sm:$0xff]
    %v44 = vld [vmem:[%s0] sm:$0xff]
    %v45 = vld [vmem:[%s0 + $0x8] sm:$0xff]
    %v46 = vld [vmem:[%s0 + $0x10] sm:$0xff]
    %v47 = vld [vmem:[%s0 + $0x18] sm:$0xff]
    %v48 = vld [vmem:[%s0 + $0x20] sm:$0xff]
    %v49 = vld [vmem:[%s0 + $0x28] sm:$0xff]
    %v50 = vld [vmem:[%s0 + $0x30] sm:$0xff]
    %v51 = vld [vmem:[%s0 + $0x38] sm:$0xff]
    %v52 = vlaneseq
    %v53 = vshrl.u32 %v52, 7
    %v54 = vsub.s32 0, %v53
    %v55 = vrot.slane %v29, %v54
    %vm56 = vcmask 130048
    %v58 = vsel %vm56, %v44, 0
    %v61 = vsel %vm56, %v45, 0
    %v64 = vsel %vm56, %v46, 0
    %v67 = vsel %vm56, %v47, 0
    %v70 = vsel %vm56, %v48, 0
    %v73 = vsel %vm56, %v49, 0
    %v76 = vsel %vm56, %v50, 0
    %v79 = vsel %vm56, %v51, 0
    %81 = vmatprep.subr.mxu0 0.0
    %82 = vmatpush1.msra.mxu0 %v30
    %83 = vmatprep.subr.mxu0 0.0
    %84 = vmatpush1.msra.mxu0 %v31
    %85 = vmatprep.subr.mxu0 0.0
    %86 = vmatpush1.msra.mxu0 0.0
    %87 = vmatprep.subr.mxu0 0.0
    %88 = vmatpush1.msra.mxu0 0.0
    %89 = vmatprep.subr.mxu0 0.0
    %90 = vmatpush1.msra.mxu0 0.0
    %91 = vmatprep.subr.mxu0 0.0
    %92 = vmatpush1.msra.mxu0 0.0
    %93 = vmatprep.subr.mxu0 0.0
    %94 = vmatpush1.msra.mxu0 0.0
    %95 = vmatprep.subr.mxu0 0.0
    %96 = vmatpush1.msra.mxu0 0.0
    %97 = vmatprep.subr.mxu0 0.0
    %98 = vmatpush1.msra.mxu0 0.0
    %99 = vmatprep.subr.mxu0 0.0
    %100 = vmatpush1.msra.mxu0 0.0
    %101 = vmatprep.subr.mxu0 0.0
    %102 = vmatpush1.msra.mxu0 0.0
    %103 = vmatprep.subr.mxu0 0.0
    %104 = vmatpush1.msra.mxu0 0.0
    %105 = vmatprep.subr.mxu0 0.0
    %106 = vmatpush1.msra.mxu0 0.0
    %107 = vmatprep.subr.mxu0 0.0
    %108 = vmatpush1.msra.mxu0 0.0
    %109 = vmatprep.subr.mxu0 0.0
    %110 = vmatpush1.msra.mxu0 0.0
    %111 = vmatprep.subr.mxu0 0.0
    %112 = vmatpush1.msra.mxu0 0.0
    %113 = vmatprep.subr.mxu0 0.0
    %114 = vmatpush1.msra.mxu0 0.0
    %115 = vmatprep.subr.mxu0 0.0
    %116 = vmatpush1.msra.mxu0 0.0
    %117 = vmatprep.subr.mxu0 0.0
    %118 = vmatpush1.msra.mxu0 0.0
    %119 = vmatprep.subr.mxu0 0.0
    %120 = vmatpush1.msra.mxu0 0.0
    %121 = vmatprep.subr.mxu0 0.0
    %122 = vmatpush1.msra.mxu0 0.0
    %123 = vmatprep.subr.mxu0 0.0
    %124 = vmatpush1.msra.mxu0 0.0
    %125 = vmatprep.subr.mxu0 0.0
    %126 = vmatpush1.msra.mxu0 0.0
    %127 = vmatprep.subr.mxu0 0.0
    %128 = vmatpush1.msra.mxu0 0.0
    %129 = vmatprep.subr.mxu0 0.0
    %130 = vmatpush1.msra.mxu0 0.0
    %131 = vmatprep.subr.mxu0 0.0
    %132 = vmatpush1.msra.mxu0 0.0
    %133 = vmatprep.subr.mxu0 0.0
    %134 = vmatpush1.msra.mxu0 0.0
    %135 = vmatprep.subr.mxu0 0.0
    %136 = vmatpush1.msra.mxu0 0.0
    %137 = vmatprep.subr.mxu0 0.0
    %138 = vmatpush1.msra.mxu0 0.0
    %139 = vmatprep.subr.mxu0 0.0
    %140 = vmatpush1.msra.mxu0 0.0
    %141 = vmatprep.subr.mxu0 0.0
    %142 = vmatpush1.msra.mxu0 0.0
    %143 = vmatprep.subr.mxu0 0.0
    %144 = vmatpush1.msra.mxu0 0.0
    %145 = vmatprep.mubr.f32.mxu0 0.0
    %146 = vmatmul.mubr.f32.gmra.mrb[0].mxu0 %v58
    %v147 = vpop.f32.mrb[0].mxu0
    %v148 = vadd.f32 %v55, %v147
    %v149 = vpop.f32.mrb[0].mxu0
    %150 = vmatprep.mubr.f32.mxu0 0.0
    %151 = vmatmul.mubr.f32.gmra.mrb[0].mxu0 %v61
    %v152 = vpop.f32.mrb[0].mxu0
    %v153 = vadd.f32 %v55, %v152
    %v154 = vpop.f32.mrb[0].mxu0
    %155 = vmatprep.mubr.f32.mxu0 0.0
    %156 = vmatmul.mubr.f32.gmra.mrb[0].mxu0 %v64
    %v157 = vpop.f32.mrb[0].mxu0
    %v158 = vadd.f32 %v55, %v157
    %v159 = vpop.f32.mrb[0].mxu0
    %160 = vmatprep.mubr.f32.mxu0 0.0
    %161 = vmatmul.mubr.f32.gmra.mrb[0].mxu0 %v67
    %v162 = vpop.f32.mrb[0].mxu0
    %v163 = vadd.f32 %v55, %v162
    %v164 = vpop.f32.mrb[0].mxu0
    %165 = vmatprep.mubr.f32.mxu0 0.0
    %166 = vmatmul.mubr.f32.gmra.mrb[0].mxu0 %v70
    %v167 = vpop.f32.mrb[0].mxu0
    %v168 = vadd.f32 %v55, %v167
    %v169 = vpop.f32.mrb[0].mxu0
    %170 = vmatprep.mubr.f32.mxu0 0.0
    %171 = vmatmul.mubr.f32.gmra.mrb[0].mxu0 %v73
    %v172 = vpop.f32.mrb[0].mxu0
    %v173 = vadd.f32 %v55, %v172
    %v174 = vpop.f32.mrb[0].mxu0
    %175 = vmatprep.mubr.f32.mxu0 0.0
    %176 = vmatmul.mubr.f32.gmra.mrb[0].mxu0 %v76
    %v177 = vpop.f32.mrb[0].mxu0
    %v178 = vadd.f32 %v55, %v177
    %v179 = vpop.f32.mrb[0].mxu0
    %180 = vmatprep.mubr.f32.mxu0 0.0
    %181 = vmatmul.mubr.f32.gmra.mrb[0].mxu0 %v79
    %v182 = vpop.f32.mrb[0].mxu0
    %v183 = vadd.f32 %v55, %v182
    %v184 = vpop.f32.mrb[0].mxu0
    %185 = vdwg.mxu0
    %vm186 = vcmask 261120
    %v188 = vsel %vm186, 0.0, 0
    %190 = vmatprep.subr.mxu0 0.0
    %191 = vmatpush1.msra.mxu0 %v32
    %192 = vmatprep.subr.mxu0 0.0
    %193 = vmatpush1.msra.mxu0 %v33
    %194 = vmatprep.subr.mxu0 0.0
    %195 = vmatpush1.msra.mxu0 %v34
    %196 = vmatprep.subr.mxu0 0.0
    %197 = vmatpush1.msra.mxu0 %v35
    %198 = vmatprep.subr.mxu0 0.0
    %199 = vmatpush1.msra.mxu0 0.0
    %200 = vmatprep.subr.mxu0 0.0
    %201 = vmatpush1.msra.mxu0 0.0
    %202 = vmatprep.subr.mxu0 0.0
    %203 = vmatpush1.msra.mxu0 0.0
    %204 = vmatprep.subr.mxu0 0.0
    %205 = vmatpush1.msra.mxu0 0.0
    %206 = vmatprep.subr.mxu0 0.0
    %207 = vmatpush1.msra.mxu0 0.0
    %208 = vmatprep.subr.mxu0 0.0
    %209 = vmatpush1.msra.mxu0 0.0
    %210 = vmatprep.subr.mxu0 0.0
    %211 = vmatpush1.msra.mxu0 0.0
    %212 = vmatprep.subr.mxu0 0.0
    %213 = vmatpush1.msra.mxu0 0.0
    %214 = vmatprep.subr.mxu0 0.0
    %215 = vmatpush1.msra.mxu0 0.0
    %216 = vmatprep.subr.mxu0 0.0
    %217 = vmatpush1.msra.mxu0 0.0
    %218 = vmatprep.subr.mxu0 0.0
    %219 = vmatpush1.msra.mxu0 0.0
    %220 = vmatprep.subr.mxu0 0.0
    %221 = vmatpush1.msra.mxu0 0.0
    %222 = vmatprep.subr.mxu0 0.0
    %223 = vmatpush1.msra.mxu0 0.0
    %224 = vmatprep.subr.mxu0 0.0
    %225 = vmatpush1.msra.mxu0 0.0
    %226 = vmatprep.subr.mxu0 0.0
    %227 = vmatpush1.msra.mxu0 0.0
    %228 = vmatprep.subr.mxu0 0.0
    %229 = vmatpush1.msra.mxu0 0.0
    %230 = vmatprep.subr.mxu0 0.0
    %231 = vmatpush1.msra.mxu0 0.0
    %232 = vmatprep.subr.mxu0 0.0
    %233 = vmatpush1.msra.mxu0 0.0
    %234 = vmatprep.subr.mxu0 0.0
    %235 = vmatpush1.msra.mxu0 0.0
    %236 = vmatprep.subr.mxu0 0.0
    %237 = vmatpush1.msra.mxu0 0.0
    %238 = vmatprep.subr.mxu0 0.0
    %239 = vmatpush1.msra.mxu0 0.0
    %240 = vmatprep.subr.mxu0 0.0
    %241 = vmatpush1.msra.mxu0 0.0
    %242 = vmatprep.subr.mxu0 0.0
    %243 = vmatpush1.msra.mxu0 0.0
    %244 = vmatprep.subr.mxu0 0.0
    %245 = vmatpush1.msra.mxu0 0.0
    %246 = vmatprep.subr.mxu0 0.0
    %247 = vmatpush1.msra.mxu0 0.0
    %248 = vmatprep.subr.mxu0 0.0
    %249 = vmatpush1.msra.mxu0 0.0
    %250 = vmatprep.subr.mxu0 0.0
    %251 = vmatpush1.msra.mxu0 0.0
    %252 = vmatprep.subr.mxu0 0.0
    %253 = vmatpush1.msra.mxu0 0.0
    %254 = vmatprep.mubr.f32.mxu0 0.0
    %255 = vmatmul.mubr.f32.gmra.mrb[0].mxu0 %v188
    %v256 = vpop.f32.mrb[0].mxu0
    %v257 = vadd.f32 0.0, %v256
    %v258 = vpop.f32.mrb[0].mxu0
    %259 = vdwg.mxu0
    %v260 = vadd.f32 %v148, %v257
    %v261 = vxor.u32 %v260, 2147483648
    %v262 = vmul.f32 %v261, 1.442695
    %v263 = vpow.pop %v262
    %v264 = vadd.f32 %v263, 1.0
    %v265 = vrcp.pop %v264
    %v266 = vmul.f32 1.0, %v265
    %v267 = vtanh.pop %v260
    %v268 = vmul.f32 %v266, 0.0
    %270 = vrot.lane.b32.xlu0 %v267, 32
    %v271 = vpop.permute.xlu0 %270
    %v273 = vmul.f32 %v266, %v271
    %275 = vrot.lane.b32.xlu0 %v273, 32
    %v276 = vpop.permute.xlu0 %275
    %v278 = vadd.f32 %v268, %v276
    %v279 = vtanh.pop %v278
    %281 = vrot.lane.b32.xlu0 %v279, 32
    %v282 = vpop.permute.xlu0 %281
    %v284 = vmul.f32 %v266, %v282
    %286 = vrot.lane.b32.xlu0 %v284, 64
    %v287 = vpop.permute.xlu0 %286
    %v288 = vsel %vm186, %v287, 0
    %290 = vmatprep.subr.mxu0 0.0
    %291 = vmatpush1.msra.mxu0 %v32
    %292 = vmatprep.subr.mxu0 0.0
    %293 = vmatpush1.msra.mxu0 %v33
    %294 = vmatprep.subr.mxu0 0.0
    %295 = vmatpush1.msra.mxu0 %v34
    %296 = vmatprep.subr.mxu0 0.0
    %297 = vmatpush1.msra.mxu0 %v35
    %298 = vmatprep.subr.mxu0 0.0
    %299 = vmatpush1.msra.mxu0 0.0
    %300 = vmatprep.subr.mxu0 0.0
    %301 = vmatpush1.msra.mxu0 0.0
    %302 = vmatprep.subr.mxu0 0.0
    %303 = vmatpush1.msra.mxu0 0.0
    %304 = vmatprep.subr.mxu0 0.0
    %305 = vmatpush1.msra.mxu0 0.0
    %306 = vmatprep.subr.mxu0 0.0
    %307 = vmatpush1.msra.mxu0 0.0
    %308 = vmatprep.subr.mxu0 0.0
    %309 = vmatpush1.msra.mxu0 0.0
    %310 = vmatprep.subr.mxu0 0.0
    %311 = vmatpush1.msra.mxu0 0.0
    %312 = vmatprep.subr.mxu0 0.0
    %313 = vmatpush1.msra.mxu0 0.0
    %314 = vmatprep.subr.mxu0 0.0
    %315 = vmatpush1.msra.mxu0 0.0
    %316 = vmatprep.subr.mxu0 0.0
    %317 = vmatpush1.msra.mxu0 0.0
    %318 = vmatprep.subr.mxu0 0.0
    %319 = vmatpush1.msra.mxu0 0.0
    %320 = vmatprep.subr.mxu0 0.0
    %321 = vmatpush1.msra.mxu0 0.0
    %322 = vmatprep.subr.mxu0 0.0
    %323 = vmatpush1.msra.mxu0 0.0
    %324 = vmatprep.subr.mxu0 0.0
    %325 = vmatpush1.msra.mxu0 0.0
    %326 = vmatprep.subr.mxu0 0.0
    %327 = vmatpush1.msra.mxu0 0.0
    %328 = vmatprep.subr.mxu0 0.0
    %329 = vmatpush1.msra.mxu0 0.0
    %330 = vmatprep.subr.mxu0 0.0
    %331 = vmatpush1.msra.mxu0 0.0
    %332 = vmatprep.subr.mxu0 0.0
    %333 = vmatpush1.msra.mxu0 0.0
    %334 = vmatprep.subr.mxu0 0.0
    %335 = vmatpush1.msra.mxu0 0.0
    %336 = vmatprep.subr.mxu0 0.0
    %337 = vmatpush1.msra.mxu0 0.0
    %338 = vmatprep.subr.mxu0 0.0
    %339 = vmatpush1.msra.mxu0 0.0
    %340 = vmatprep.subr.mxu0 0.0
    %341 = vmatpush1.msra.mxu0 0.0
    %342 = vmatprep.subr.mxu0 0.0
    %343 = vmatpush1.msra.mxu0 0.0
    %344 = vmatprep.subr.mxu0 0.0
    %345 = vmatpush1.msra.mxu0 0.0
    %346 = vmatprep.subr.mxu0 0.0
    %347 = vmatpush1.msra.mxu0 0.0
    %348 = vmatprep.subr.mxu0 0.0
    %349 = vmatpush1.msra.mxu0 0.0
    %350 = vmatprep.subr.mxu0 0.0
    %351 = vmatpush1.msra.mxu0 0.0
    %352 = vmatprep.subr.mxu0 0.0
    %353 = vmatpush1.msra.mxu0 0.0
    %354 = vmatprep.mubr.f32.mxu0 0.0
    %355 = vmatmul.mubr.f32.gmra.mrb[0].mxu0 %v288
    %v356 = vpop.f32.mrb[0].mxu0
    %v357 = vadd.f32 0.0, %v356
    %v358 = vpop.f32.mrb[0].mxu0
    %359 = vdwg.mxu0
    %v360 = vadd.f32 %v153, %v357
    %v361 = vxor.u32 %v360, 2147483648
    %v362 = vmul.f32 %v361, 1.442695
    %v363 = vpow.pop %v362
    %v364 = vadd.f32 %v363, 1.0
    %v365 = vrcp.pop %v364
    %v366 = vmul.f32 1.0, %v365
    %v367 = vtanh.pop %v360
    %v368 = vmul.f32 %v366, %v278
    %370 = vrot.lane.b32.xlu0 %v367, 32
    %v371 = vpop.permute.xlu0 %370
    %v373 = vmul.f32 %v366, %v371
    %375 = vrot.lane.b32.xlu0 %v373, 32
    %v376 = vpop.permute.xlu0 %375
    %v378 = vadd.f32 %v368, %v376
    %v379 = vtanh.pop %v378
    %381 = vrot.lane.b32.xlu0 %v379, 32
    %v382 = vpop.permute.xlu0 %381
    %v384 = vmul.f32 %v366, %v382
    %v385 = vlaneseq
    %v386 = vshrl.u32 %v385, 7
    %v387 = vsub.s32 1, %v386
    %v388 = vrot.slane %v29, %v387
    %389 = vmatprep.subr.mxu0 0.0
    %390 = vmatpush1.msra.mxu0 %v36
    %391 = vmatprep.subr.mxu0 0.0
    %392 = vmatpush1.msra.mxu0 %v37
    %393 = vmatprep.subr.mxu0 0.0
    %394 = vmatpush1.msra.mxu0 %v38
    %395 = vmatprep.subr.mxu0 0.0
    %396 = vmatpush1.msra.mxu0 %v39
    %397 = vmatprep.subr.mxu0 0.0
    %398 = vmatpush1.msra.mxu0 0.0
    %399 = vmatprep.subr.mxu0 0.0
    %400 = vmatpush1.msra.mxu0 0.0
    %401 = vmatprep.subr.mxu0 0.0
    %402 = vmatpush1.msra.mxu0 0.0
    %403 = vmatprep.subr.mxu0 0.0
    %404 = vmatpush1.msra.mxu0 0.0
    %405 = vmatprep.subr.mxu0 0.0
    %406 = vmatpush1.msra.mxu0 0.0
    %407 = vmatprep.subr.mxu0 0.0
    %408 = vmatpush1.msra.mxu0 0.0
    %409 = vmatprep.subr.mxu0 0.0
    %410 = vmatpush1.msra.mxu0 0.0
    %411 = vmatprep.subr.mxu0 0.0
    %412 = vmatpush1.msra.mxu0 0.0
    %413 = vmatprep.subr.mxu0 0.0
    %414 = vmatpush1.msra.mxu0 0.0
    %415 = vmatprep.subr.mxu0 0.0
    %416 = vmatpush1.msra.mxu0 0.0
    %417 = vmatprep.subr.mxu0 0.0
    %418 = vmatpush1.msra.mxu0 0.0
    %419 = vmatprep.subr.mxu0 0.0
    %420 = vmatpush1.msra.mxu0 0.0
    %421 = vmatprep.subr.mxu0 0.0
    %422 = vmatpush1.msra.mxu0 0.0
    %423 = vmatprep.subr.mxu0 0.0
    %424 = vmatpush1.msra.mxu0 0.0
    %425 = vmatprep.subr.mxu0 0.0
    %426 = vmatpush1.msra.mxu0 0.0
    %427 = vmatprep.subr.mxu0 0.0
    %428 = vmatpush1.msra.mxu0 0.0
    %429 = vmatprep.subr.mxu0 0.0
    %430 = vmatpush1.msra.mxu0 0.0
    %431 = vmatprep.subr.mxu0 0.0
    %432 = vmatpush1.msra.mxu0 0.0
    %433 = vmatprep.subr.mxu0 0.0
    %434 = vmatpush1.msra.mxu0 0.0
    %435 = vmatprep.subr.mxu0 0.0
    %436 = vmatpush1.msra.mxu0 0.0
    %437 = vmatprep.subr.mxu0 0.0
    %438 = vmatpush1.msra.mxu0 0.0
    %439 = vmatprep.subr.mxu0 0.0
    %440 = vmatpush1.msra.mxu0 0.0
    %441 = vmatprep.subr.mxu0 0.0
    %442 = vmatpush1.msra.mxu0 0.0
    %443 = vmatprep.subr.mxu0 0.0
    %444 = vmatpush1.msra.mxu0 0.0
    %445 = vmatprep.subr.mxu0 0.0
    %446 = vmatpush1.msra.mxu0 0.0
    %447 = vmatprep.subr.mxu0 0.0
    %448 = vmatpush1.msra.mxu0 0.0
    %449 = vmatprep.subr.mxu0 0.0
    %450 = vmatpush1.msra.mxu0 0.0
    %451 = vmatprep.subr.mxu0 0.0
    %452 = vmatpush1.msra.mxu0 0.0
    %453 = vmatprep.mubr.f32.mxu0 0.0
    %454 = vmatmul.mubr.f32.gmra.mrb[0].mxu0 %v288
    %v455 = vpop.f32.mrb[0].mxu0
    %v456 = vadd.f32 %v388, %v455
    %v457 = vpop.f32.mrb[0].mxu0
    %458 = vdwg.mxu0
    %459 = vmatprep.subr.mxu0 0.0
    %460 = vmatpush1.msra.mxu0 %v40
    %461 = vmatprep.subr.mxu0 0.0
    %462 = vmatpush1.msra.mxu0 %v41
    %463 = vmatprep.subr.mxu0 0.0
    %464 = vmatpush1.msra.mxu0 %v42
    %465 = vmatprep.subr.mxu0 0.0
    %466 = vmatpush1.msra.mxu0 %v43
    %467 = vmatprep.subr.mxu0 0.0
    %468 = vmatpush1.msra.mxu0 0.0
    %469 = vmatprep.subr.mxu0 0.0
    %470 = vmatpush1.msra.mxu0 0.0
    %471 = vmatprep.subr.mxu0 0.0
    %472 = vmatpush1.msra.mxu0 0.0
    %473 = vmatprep.subr.mxu0 0.0
    %474 = vmatpush1.msra.mxu0 0.0
    %475 = vmatprep.subr.mxu0 0.0
    %476 = vmatpush1.msra.mxu0 0.0
    %477 = vmatprep.subr.mxu0 0.0
    %478 = vmatpush1.msra.mxu0 0.0
    %479 = vmatprep.subr.mxu0 0.0
    %480 = vmatpush1.msra.mxu0 0.0
    %481 = vmatprep.subr.mxu0 0.0
    %482 = vmatpush1.msra.mxu0 0.0
    %483 = vmatprep.subr.mxu0 0.0
    %484 = vmatpush1.msra.mxu0 0.0
    %485 = vmatprep.subr.mxu0 0.0
    %486 = vmatpush1.msra.mxu0 0.0
    %487 = vmatprep.subr.mxu0 0.0
    %488 = vmatpush1.msra.mxu0 0.0
    %489 = vmatprep.subr.mxu0 0.0
    %490 = vmatpush1.msra.mxu0 0.0
    %491 = vmatprep.subr.mxu0 0.0
    %492 = vmatpush1.msra.mxu0 0.0
    %493 = vmatprep.subr.mxu0 0.0
    %494 = vmatpush1.msra.mxu0 0.0
    %495 = vmatprep.subr.mxu0 0.0
    %496 = vmatpush1.msra.mxu0 0.0
    %497 = vmatprep.subr.mxu0 0.0
    %498 = vmatpush1.msra.mxu0 0.0
    %499 = vmatprep.subr.mxu0 0.0
    %500 = vmatpush1.msra.mxu0 0.0
    %501 = vmatprep.subr.mxu0 0.0
    %502 = vmatpush1.msra.mxu0 0.0
    %503 = vmatprep.subr.mxu0 0.0
    %504 = vmatpush1.msra.mxu0 0.0
    %505 = vmatprep.subr.mxu0 0.0
    %506 = vmatpush1.msra.mxu0 0.0
    %507 = vmatprep.subr.mxu0 0.0
    %508 = vmatpush1.msra.mxu0 0.0
    %509 = vmatprep.subr.mxu0 0.0
    %510 = vmatpush1.msra.mxu0 0.0
    %511 = vmatprep.subr.mxu0 0.0
    %512 = vmatpush1.msra.mxu0 0.0
    %513 = vmatprep.subr.mxu0 0.0
    %514 = vmatpush1.msra.mxu0 0.0
    %515 = vmatprep.subr.mxu0 0.0
    %516 = vmatpush1.msra.mxu0 0.0
    %517 = vmatprep.subr.mxu0 0.0
    %518 = vmatpush1.msra.mxu0 0.0
    %519 = vmatprep.subr.mxu0 0.0
    %520 = vmatpush1.msra.mxu0 0.0
    %521 = vmatprep.subr.mxu0 0.0
    %522 = vmatpush1.msra.mxu0 0.0
    %523 = vmatprep.mubr.f32.mxu0 0.0
    %524 = vmatmul.mubr.f32.gmra.mrb[0].mxu0 %v188
    %v525 = vpop.f32.mrb[0].mxu0
    %v526 = vadd.f32 0.0, %v525
    %v527 = vpop.f32.mrb[0].mxu0
    %528 = vdwg.mxu0
    %v529 = vadd.f32 %v456, %v526
    %v530 = vxor.u32 %v529, 2147483648
    %v531 = vmul.f32 %v530, 1.442695
    %v532 = vpow.pop %v531
    %v533 = vadd.f32 %v532, 1.0
    %v534 = vrcp.pop %v533
    %v535 = vmul.f32 1.0, %v534
    %v536 = vtanh.pop %v529
    %v537 = vmul.f32 %v535, 0.0
    %539 = vrot.lane.b32.xlu0 %v536, 32
    %v540 = vpop.permute.xlu0 %539
    %v542 = vmul.f32 %v535, %v540
    %544 = vrot.lane.b32.xlu0 %v542, 32
    %v545 = vpop.permute.xlu0 %544
    %v547 = vadd.f32 %v537, %v545
    %v548 = vtanh.pop %v547
    %550 = vrot.lane.b32.xlu0 %v548, 32
    %v551 = vpop.permute.xlu0 %550
    %v553 = vmul.f32 %v535, %v551
    %555 = vrot.lane.b32.xlu0 %v384, 64
    %v556 = vpop.permute.xlu0 %555
    %v557 = vsel %vm186, %v556, 0
    %559 = vmatprep.subr.mxu0 0.0
    %560 = vmatpush1.msra.mxu0 %v32
    %561 = vmatprep.subr.mxu0 0.0
    %562 = vmatpush1.msra.mxu0 %v33
    %563 = vmatprep.subr.mxu0 0.0
    %564 = vmatpush1.msra.mxu0 %v34
    %565 = vmatprep.subr.mxu0 0.0
    %566 = vmatpush1.msra.mxu0 %v35
    %567 = vmatprep.subr.mxu0 0.0
    %568 = vmatpush1.msra.mxu0 0.0
    %569 = vmatprep.subr.mxu0 0.0
    %570 = vmatpush1.msra.mxu0 0.0
    %571 = vmatprep.subr.mxu0 0.0
    %572 = vmatpush1.msra.mxu0 0.0
    %573 = vmatprep.subr.mxu0 0.0
    %574 = vmatpush1.msra.mxu0 0.0
    %575 = vmatprep.subr.mxu0 0.0
    %576 = vmatpush1.msra.mxu0 0.0
    %577 = vmatprep.subr.mxu0 0.0
    %578 = vmatpush1.msra.mxu0 0.0
    %579 = vmatprep.subr.mxu0 0.0
    %580 = vmatpush1.msra.mxu0 0.0
    %581 = vmatprep.subr.mxu0 0.0
    %582 = vmatpush1.msra.mxu0 0.0
    %583 = vmatprep.subr.mxu0 0.0
    %584 = vmatpush1.msra.mxu0 0.0
    %585 = vmatprep.subr.mxu0 0.0
    %586 = vmatpush1.msra.mxu0 0.0
    %587 = vmatprep.subr.mxu0 0.0
    %588 = vmatpush1.msra.mxu0 0.0
    %589 = vmatprep.subr.mxu0 0.0
    %590 = vmatpush1.msra.mxu0 0.0
    %591 = vmatprep.subr.mxu0 0.0
    %592 = vmatpush1.msra.mxu0 0.0
    %593 = vmatprep.subr.mxu0 0.0
    %594 = vmatpush1.msra.mxu0 0.0
    %595 = vmatprep.subr.mxu0 0.0
    %596 = vmatpush1.msra.mxu0 0.0
    %597 = vmatprep.subr.mxu0 0.0
    %598 = vmatpush1.msra.mxu0 0.0
    %599 = vmatprep.subr.mxu0 0.0
    %600 = vmatpush1.msra.mxu0 0.0
    %601 = vmatprep.subr.mxu0 0.0
    %602 = vmatpush1.msra.mxu0 0.0
    %603 = vmatprep.subr.mxu0 0.0
    %604 = vmatpush1.msra.mxu0 0.0
    %605 = vmatprep.subr.mxu0 0.0
    %606 = vmatpush1.msra.mxu0 0.0
    %607 = vmatprep.subr.mxu0 0.0
    %608 = vmatpush1.msra.mxu0 0.0
    %609 = vmatprep.subr.mxu0 0.0
    %610 = vmatpush1.msra.mxu0 0.0
    %611 = vmatprep.subr.mxu0 0.0
    %612 = vmatpush1.msra.mxu0 0.0
    %613 = vmatprep.subr.mxu0 0.0
    %614 = vmatpush1.msra.mxu0 0.0
    %615 = vmatprep.subr.mxu0 0.0
    %616 = vmatpush1.msra.mxu0 0.0
    %617 = vmatprep.subr.mxu0 0.0
    %618 = vmatpush1.msra.mxu0 0.0
    %619 = vmatprep.subr.mxu0 0.0
    %620 = vmatpush1.msra.mxu0 0.0
    %621 = vmatprep.subr.mxu0 0.0
    %622 = vmatpush1.msra.mxu0 0.0
    %623 = vmatprep.mubr.f32.mxu0 0.0
    %624 = vmatmul.mubr.f32.gmra.mrb[0].mxu0 %v557
    %v625 = vpop.f32.mrb[0].mxu0
    %v626 = vadd.f32 0.0, %v625
    %v627 = vpop.f32.mrb[0].mxu0
    %628 = vdwg.mxu0
    %v629 = vadd.f32 %v158, %v626
    %v630 = vxor.u32 %v629, 2147483648
    %v631 = vmul.f32 %v630, 1.442695
    %v632 = vpow.pop %v631
    %v633 = vadd.f32 %v632, 1.0
    %v634 = vrcp.pop %v633
    %v635 = vmul.f32 1.0, %v634
    %v636 = vtanh.pop %v629
    %v637 = vmul.f32 %v635, %v378
    %639 = vrot.lane.b32.xlu0 %v636, 32
    %v640 = vpop.permute.xlu0 %639
    %v642 = vmul.f32 %v635, %v640
    %644 = vrot.lane.b32.xlu0 %v642, 32
    %v645 = vpop.permute.xlu0 %644
    %v647 = vadd.f32 %v637, %v645
    %v648 = vtanh.pop %v647
    %650 = vrot.lane.b32.xlu0 %v648, 32
    %v651 = vpop.permute.xlu0 %650
    %v653 = vmul.f32 %v635, %v651
    %654 = vmatprep.subr.mxu0 0.0
    %655 = vmatpush1.msra.mxu0 %v36
    %656 = vmatprep.subr.mxu0 0.0
    %657 = vmatpush1.msra.mxu0 %v37
    %658 = vmatprep.subr.mxu0 0.0
    %659 = vmatpush1.msra.mxu0 %v38
    %660 = vmatprep.subr.mxu0 0.0
    %661 = vmatpush1.msra.mxu0 %v39
    %662 = vmatprep.subr.mxu0 0.0
    %663 = vmatpush1.msra.mxu0 0.0
    %664 = vmatprep.subr.mxu0 0.0
    %665 = vmatpush1.msra.mxu0 0.0
    %666 = vmatprep.subr.mxu0 0.0
    %667 = vmatpush1.msra.mxu0 0.0
    %668 = vmatprep.subr.mxu0 0.0
    %669 = vmatpush1.msra.mxu0 0.0
    %670 = vmatprep.subr.mxu0 0.0
    %671 = vmatpush1.msra.mxu0 0.0
    %672 = vmatprep.subr.mxu0 0.0
    %673 = vmatpush1.msra.mxu0 0.0
    %674 = vmatprep.subr.mxu0 0.0
    %675 = vmatpush1.msra.mxu0 0.0
    %676 = vmatprep.subr.mxu0 0.0
    %677 = vmatpush1.msra.mxu0 0.0
    %678 = vmatprep.subr.mxu0 0.0
    %679 = vmatpush1.msra.mxu0 0.0
    %680 = vmatprep.subr.mxu0 0.0
    %681 = vmatpush1.msra.mxu0 0.0
    %682 = vmatprep.subr.mxu0 0.0
    %683 = vmatpush1.msra.mxu0 0.0
    %684 = vmatprep.subr.mxu0 0.0
    %685 = vmatpush1.msra.mxu0 0.0
    %686 = vmatprep.subr.mxu0 0.0
    %687 = vmatpush1.msra.mxu0 0.0
    %688 = vmatprep.subr.mxu0 0.0
    %689 = vmatpush1.msra.mxu0 0.0
    %690 = vmatprep.subr.mxu0 0.0
    %691 = vmatpush1.msra.mxu0 0.0
    %692 = vmatprep.subr.mxu0 0.0
    %693 = vmatpush1.msra.mxu0 0.0
    %694 = vmatprep.subr.mxu0 0.0
    %695 = vmatpush1.msra.mxu0 0.0
    %696 = vmatprep.subr.mxu0 0.0
    %697 = vmatpush1.msra.mxu0 0.0
    %698 = vmatprep.subr.mxu0 0.0
    %699 = vmatpush1.msra.mxu0 0.0
    %700 = vmatprep.subr.mxu0 0.0
    %701 = vmatpush1.msra.mxu0 0.0
    %702 = vmatprep.subr.mxu0 0.0
    %703 = vmatpush1.msra.mxu0 0.0
    %704 = vmatprep.subr.mxu0 0.0
    %705 = vmatpush1.msra.mxu0 0.0
    %706 = vmatprep.subr.mxu0 0.0
    %707 = vmatpush1.msra.mxu0 0.0
    %708 = vmatprep.subr.mxu0 0.0
    %709 = vmatpush1.msra.mxu0 0.0
    %710 = vmatprep.subr.mxu0 0.0
    %711 = vmatpush1.msra.mxu0 0.0
    %712 = vmatprep.subr.mxu0 0.0
    %713 = vmatpush1.msra.mxu0 0.0
    %714 = vmatprep.subr.mxu0 0.0
    %715 = vmatpush1.msra.mxu0 0.0
    %716 = vmatprep.subr.mxu0 0.0
    %717 = vmatpush1.msra.mxu0 0.0
    %718 = vmatprep.mubr.f32.mxu0 0.0
    %719 = vmatmul.mubr.f32.gmra.mrb[0].mxu0 %v557
    %v720 = vpop.f32.mrb[0].mxu0
    %v721 = vadd.f32 %v388, %v720
    %v722 = vpop.f32.mrb[0].mxu0
    %723 = vdwg.mxu0
    %725 = vrot.lane.b32.xlu0 %v553, 64
    %v726 = vpop.permute.xlu0 %725
    %v727 = vsel %vm186, %v726, 0
    %729 = vmatprep.subr.mxu0 0.0
    %730 = vmatpush1.msra.mxu0 %v40
    %731 = vmatprep.subr.mxu0 0.0
    %732 = vmatpush1.msra.mxu0 %v41
    %733 = vmatprep.subr.mxu0 0.0
    %734 = vmatpush1.msra.mxu0 %v42
    %735 = vmatprep.subr.mxu0 0.0
    %736 = vmatpush1.msra.mxu0 %v43
    %737 = vmatprep.subr.mxu0 0.0
    %738 = vmatpush1.msra.mxu0 0.0
    %739 = vmatprep.subr.mxu0 0.0
    %740 = vmatpush1.msra.mxu0 0.0
    %741 = vmatprep.subr.mxu0 0.0
    %742 = vmatpush1.msra.mxu0 0.0
    %743 = vmatprep.subr.mxu0 0.0
    %744 = vmatpush1.msra.mxu0 0.0
    %745 = vmatprep.subr.mxu0 0.0
    %746 = vmatpush1.msra.mxu0 0.0
    %747 = vmatprep.subr.mxu0 0.0
    %748 = vmatpush1.msra.mxu0 0.0
    %749 = vmatprep.subr.mxu0 0.0
    %750 = vmatpush1.msra.mxu0 0.0
    %751 = vmatprep.subr.mxu0 0.0
    %752 = vmatpush1.msra.mxu0 0.0
    %753 = vmatprep.subr.mxu0 0.0
    %754 = vmatpush1.msra.mxu0 0.0
    %755 = vmatprep.subr.mxu0 0.0
    %756 = vmatpush1.msra.mxu0 0.0
    %757 = vmatprep.subr.mxu0 0.0
    %758 = vmatpush1.msra.mxu0 0.0
    %759 = vmatprep.subr.mxu0 0.0
    %760 = vmatpush1.msra.mxu0 0.0
    %761 = vmatprep.subr.mxu0 0.0
    %762 = vmatpush1.msra.mxu0 0.0
    %763 = vmatprep.subr.mxu0 0.0
    %764 = vmatpush1.msra.mxu0 0.0
    %765 = vmatprep.subr.mxu0 0.0
    %766 = vmatpush1.msra.mxu0 0.0
    %767 = vmatprep.subr.mxu0 0.0
    %768 = vmatpush1.msra.mxu0 0.0
    %769 = vmatprep.subr.mxu0 0.0
    %770 = vmatpush1.msra.mxu0 0.0
    %771 = vmatprep.subr.mxu0 0.0
    %772 = vmatpush1.msra.mxu0 0.0
    %773 = vmatprep.subr.mxu0 0.0
    %774 = vmatpush1.msra.mxu0 0.0
    %775 = vmatprep.subr.mxu0 0.0
    %776 = vmatpush1.msra.mxu0 0.0
    %777 = vmatprep.subr.mxu0 0.0
    %778 = vmatpush1.msra.mxu0 0.0
    %779 = vmatprep.subr.mxu0 0.0
    %780 = vmatpush1.msra.mxu0 0.0
    %781 = vmatprep.subr.mxu0 0.0
    %782 = vmatpush1.msra.mxu0 0.0
    %783 = vmatprep.subr.mxu0 0.0
    %784 = vmatpush1.msra.mxu0 0.0
    %785 = vmatprep.subr.mxu0 0.0
    %786 = vmatpush1.msra.mxu0 0.0
    %787 = vmatprep.subr.mxu0 0.0
    %788 = vmatpush1.msra.mxu0 0.0
    %789 = vmatprep.subr.mxu0 0.0
    %790 = vmatpush1.msra.mxu0 0.0
    %791 = vmatprep.subr.mxu0 0.0
    %792 = vmatpush1.msra.mxu0 0.0
    %793 = vmatprep.mubr.f32.mxu0 0.0
    %794 = vmatmul.mubr.f32.gmra.mrb[0].mxu0 %v727
    %v795 = vpop.f32.mrb[0].mxu0
    %v796 = vadd.f32 0.0, %v795
    %v797 = vpop.f32.mrb[0].mxu0
    %798 = vdwg.mxu0
    %v799 = vadd.f32 %v721, %v796
    %v800 = vxor.u32 %v799, 2147483648
    %v801 = vmul.f32 %v800, 1.442695
    %v802 = vpow.pop %v801
    %v803 = vadd.f32 %v802, 1.0
    %v804 = vrcp.pop %v803
    %v805 = vmul.f32 1.0, %v804
    %v806 = vtanh.pop %v799
    %v807 = vmul.f32 %v805, %v547
    %809 = vrot.lane.b32.xlu0 %v806, 32
    %v810 = vpop.permute.xlu0 %809
    %v812 = vmul.f32 %v805, %v810
    %814 = vrot.lane.b32.xlu0 %v812, 32
    %v815 = vpop.permute.xlu0 %814
    %v817 = vadd.f32 %v807, %v815
    %v818 = vtanh.pop %v817
    %820 = vrot.lane.b32.xlu0 %v818, 32
    %v821 = vpop.permute.xlu0 %820
    %v823 = vmul.f32 %v805, %v821
    %825 = vrot.lane.b32.xlu0 %v653, 64
    %v826 = vpop.permute.xlu0 %825
    %v827 = vsel %vm186, %v826, 0
    %829 = vmatprep.subr.mxu0 0.0
    %830 = vmatpush1.msra.mxu0 %v32
    %831 = vmatprep.subr.mxu0 0.0
    %832 = vmatpush1.msra.mxu0 %v33
    %833 = vmatprep.subr.mxu0 0.0
    %834 = vmatpush1.msra.mxu0 %v34
    %835 = vmatprep.subr.mxu0 0.0
    %836 = vmatpush1.msra.mxu0 %v35
    %837 = vmatprep.subr.mxu0 0.0
    %838 = vmatpush1.msra.mxu0 0.0
    %839 = vmatprep.subr.mxu0 0.0
    %840 = vmatpush1.msra.mxu0 0.0
    %841 = vmatprep.subr.mxu0 0.0
    %842 = vmatpush1.msra.mxu0 0.0
    %843 = vmatprep.subr.mxu0 0.0
    %844 = vmatpush1.msra.mxu0 0.0
    %845 = vmatprep.subr.mxu0 0.0
    %846 = vmatpush1.msra.mxu0 0.0
    %847 = vmatprep.subr.mxu0 0.0
    %848 = vmatpush1.msra.mxu0 0.0
    %849 = vmatprep.subr.mxu0 0.0
    %850 = vmatpush1.msra.mxu0 0.0
    %851 = vmatprep.subr.mxu0 0.0
    %852 = vmatpush1.msra.mxu0 0.0
    %853 = vmatprep.subr.mxu0 0.0
    %854 = vmatpush1.msra.mxu0 0.0
    %855 = vmatprep.subr.mxu0 0.0
    %856 = vmatpush1.msra.mxu0 0.0
    %857 = vmatprep.subr.mxu0 0.0
    %858 = vmatpush1.msra.mxu0 0.0
    %859 = vmatprep.subr.mxu0 0.0
    %860 = vmatpush1.msra.mxu0 0.0
    %861 = vmatprep.subr.mxu0 0.0
    %862 = vmatpush1.msra.mxu0 0.0
    %863 = vmatprep.subr.mxu0 0.0
    %864 = vmatpush1.msra.mxu0 0.0
    %865 = vmatprep.subr.mxu0 0.0
    %866 = vmatpush1.msra.mxu0 0.0
    %867 = vmatprep.subr.mxu0 0.0
    %868 = vmatpush1.msra.mxu0 0.0
    %869 = vmatprep.subr.mxu0 0.0
    %870 = vmatpush1.msra.mxu0 0.0
    %871 = vmatprep.subr.mxu0 0.0
    %872 = vmatpush1.msra.mxu0 0.0
    %873 = vmatprep.subr.mxu0 0.0
    %874 = vmatpush1.msra.mxu0 0.0
    %875 = vmatprep.subr.mxu0 0.0
    %876 = vmatpush1.msra.mxu0 0.0
    %877 = vmatprep.subr.mxu0 0.0
    %878 = vmatpush1.msra.mxu0 0.0
    %879 = vmatprep.subr.mxu0 0.0
    %880 = vmatpush1.msra.mxu0 0.0
    %881 = vmatprep.subr.mxu0 0.0
    %882 = vmatpush1.msra.mxu0 0.0
    %883 = vmatprep.subr.mxu0 0.0
    %884 = vmatpush1.msra.mxu0 0.0
    %885 = vmatprep.subr.mxu0 0.0
    %886 = vmatpush1.msra.mxu0 0.0
    %887 = vmatprep.subr.mxu0 0.0
    %888 = vmatpush1.msra.mxu0 0.0
    %889 = vmatprep.subr.mxu0 0.0
    %890 = vmatpush1.msra.mxu0 0.0
    %891 = vmatprep.subr.mxu0 0.0
    %892 = vmatpush1.msra.mxu0 0.0
    %893 = vmatprep.mubr.f32.mxu0 0.0
    %894 = vmatmul.mubr.f32.gmra.mrb[0].mxu0 %v827
    %v895 = vpop.f32.mrb[0].mxu0
    %v896 = vadd.f32 0.0, %v895
    %v897 = vpop.f32.mrb[0].mxu0
    %898 = vdwg.mxu0
    %v899 = vadd.f32 %v163, %v896
    %v900 = vxor.u32 %v899, 2147483648
    %v901 = vmul.f32 %v900, 1.442695
    %v902 = vpow.pop %v901
    %v903 = vadd.f32 %v902, 1.0
    %v904 = vrcp.pop %v903
    %v905 = vmul.f32 1.0, %v904
    %v906 = vtanh.pop %v899
    %v907 = vmul.f32 %v905, %v647
    %909 = vrot.lane.b32.xlu0 %v906, 32
    %v910 = vpop.permute.xlu0 %909
    %v912 = vmul.f32 %v905, %v910
    %914 = vrot.lane.b32.xlu0 %v912, 32
    %v915 = vpop.permute.xlu0 %914
    %v917 = vadd.f32 %v907, %v915
    %v918 = vtanh.pop %v917
    %920 = vrot.lane.b32.xlu0 %v918, 32
    %v921 = vpop.permute.xlu0 %920
    %v923 = vmul.f32 %v905, %v921
    %924 = vmatprep.subr.mxu0 0.0
    %925 = vmatpush1.msra.mxu0 %v36
    %926 = vmatprep.subr.mxu0 0.0
    %927 = vmatpush1.msra.mxu0 %v37
    %928 = vmatprep.subr.mxu0 0.0
    %929 = vmatpush1.msra.mxu0 %v38
    %930 = vmatprep.subr.mxu0 0.0
    %931 = vmatpush1.msra.mxu0 %v39
    %932 = vmatprep.subr.mxu0 0.0
    %933 = vmatpush1.msra.mxu0 0.0
    %934 = vmatprep.subr.mxu0 0.0
    %935 = vmatpush1.msra.mxu0 0.0
    %936 = vmatprep.subr.mxu0 0.0
    %937 = vmatpush1.msra.mxu0 0.0
    %938 = vmatprep.subr.mxu0 0.0
    %939 = vmatpush1.msra.mxu0 0.0
    %940 = vmatprep.subr.mxu0 0.0
    %941 = vmatpush1.msra.mxu0 0.0
    %942 = vmatprep.subr.mxu0 0.0
    %943 = vmatpush1.msra.mxu0 0.0
    %944 = vmatprep.subr.mxu0 0.0
    %945 = vmatpush1.msra.mxu0 0.0
    %946 = vmatprep.subr.mxu0 0.0
    %947 = vmatpush1.msra.mxu0 0.0
    %948 = vmatprep.subr.mxu0 0.0
    %949 = vmatpush1.msra.mxu0 0.0
    %950 = vmatprep.subr.mxu0 0.0
    %951 = vmatpush1.msra.mxu0 0.0
    %952 = vmatprep.subr.mxu0 0.0
    %953 = vmatpush1.msra.mxu0 0.0
    %954 = vmatprep.subr.mxu0 0.0
    %955 = vmatpush1.msra.mxu0 0.0
    %956 = vmatprep.subr.mxu0 0.0
    %957 = vmatpush1.msra.mxu0 0.0
    %958 = vmatprep.subr.mxu0 0.0
    %959 = vmatpush1.msra.mxu0 0.0
    %960 = vmatprep.subr.mxu0 0.0
    %961 = vmatpush1.msra.mxu0 0.0
    %962 = vmatprep.subr.mxu0 0.0
    %963 = vmatpush1.msra.mxu0 0.0
    %964 = vmatprep.subr.mxu0 0.0
    %965 = vmatpush1.msra.mxu0 0.0
    %966 = vmatprep.subr.mxu0 0.0
    %967 = vmatpush1.msra.mxu0 0.0
    %968 = vmatprep.subr.mxu0 0.0
    %969 = vmatpush1.msra.mxu0 0.0
    %970 = vmatprep.subr.mxu0 0.0
    %971 = vmatpush1.msra.mxu0 0.0
    %972 = vmatprep.subr.mxu0 0.0
    %973 = vmatpush1.msra.mxu0 0.0
    %974 = vmatprep.subr.mxu0 0.0
    %975 = vmatpush1.msra.mxu0 0.0
    %976 = vmatprep.subr.mxu0 0.0
    %977 = vmatpush1.msra.mxu0 0.0
    %978 = vmatprep.subr.mxu0 0.0
    %979 = vmatpush1.msra.mxu0 0.0
    %980 = vmatprep.subr.mxu0 0.0
    %981 = vmatpush1.msra.mxu0 0.0
    %982 = vmatprep.subr.mxu0 0.0
    %983 = vmatpush1.msra.mxu0 0.0
    %984 = vmatprep.subr.mxu0 0.0
    %985 = vmatpush1.msra.mxu0 0.0
    %986 = vmatprep.subr.mxu0 0.0
    %987 = vmatpush1.msra.mxu0 0.0
    %988 = vmatprep.mubr.f32.mxu0 0.0
    %989 = vmatmul.mubr.f32.gmra.mrb[0].mxu0 %v827
    %v990 = vpop.f32.mrb[0].mxu0
    %v991 = vadd.f32 %v388, %v990
    %v992 = vpop.f32.mrb[0].mxu0
    %993 = vdwg.mxu0
    %995 = vrot.lane.b32.xlu0 %v823, 64
    %v996 = vpop.permute.xlu0 %995
    %v997 = vsel %vm186, %v996, 0
    %999 = vmatprep.subr.mxu0 0.0
    %1000 = vmatpush1.msra.mxu0 %v40
    %1001 = vmatprep.subr.mxu0 0.0
    %1002 = vmatpush1.msra.mxu0 %v41
    %1003 = vmatprep.subr.mxu0 0.0
    %1004 = vmatpush1.msra.mxu0 %v42
    %1005 = vmatprep.subr.mxu0 0.0
    %1006 = vmatpush1.msra.mxu0 %v43
    %1007 = vmatprep.subr.mxu0 0.0
    %1008 = vmatpush1.msra.mxu0 0.0
    %1009 = vmatprep.subr.mxu0 0.0
    %1010 = vmatpush1.msra.mxu0 0.0
    %1011 = vmatprep.subr.mxu0 0.0
    %1012 = vmatpush1.msra.mxu0 0.0
    %1013 = vmatprep.subr.mxu0 0.0
    %1014 = vmatpush1.msra.mxu0 0.0
    %1015 = vmatprep.subr.mxu0 0.0
    %1016 = vmatpush1.msra.mxu0 0.0
    %1017 = vmatprep.subr.mxu0 0.0
    %1018 = vmatpush1.msra.mxu0 0.0
    %1019 = vmatprep.subr.mxu0 0.0
    %1020 = vmatpush1.msra.mxu0 0.0
    %1021 = vmatprep.subr.mxu0 0.0
    %1022 = vmatpush1.msra.mxu0 0.0
    %1023 = vmatprep.subr.mxu0 0.0
    %1024 = vmatpush1.msra.mxu0 0.0
    %1025 = vmatprep.subr.mxu0 0.0
    %1026 = vmatpush1.msra.mxu0 0.0
    %1027 = vmatprep.subr.mxu0 0.0
    %1028 = vmatpush1.msra.mxu0 0.0
    %1029 = vmatprep.subr.mxu0 0.0
    %1030 = vmatpush1.msra.mxu0 0.0
    %1031 = vmatprep.subr.mxu0 0.0
    %1032 = vmatpush1.msra.mxu0 0.0
    %1033 = vmatprep.subr.mxu0 0.0
    %1034 = vmatpush1.msra.mxu0 0.0
    %1035 = vmatprep.subr.mxu0 0.0
    %1036 = vmatpush1.msra.mxu0 0.0
    %1037 = vmatprep.subr.mxu0 0.0
    %1038 = vmatpush1.msra.mxu0 0.0
    %1039 = vmatprep.subr.mxu0 0.0
    %1040 = vmatpush1.msra.mxu0 0.0
    %1041 = vmatprep.subr.mxu0 0.0
    %1042 = vmatpush1.msra.mxu0 0.0
    %1043 = vmatprep.subr.mxu0 0.0
    %1044 = vmatpush1.msra.mxu0 0.0
    %1045 = vmatprep.subr.mxu0 0.0
    %1046 = vmatpush1.msra.mxu0 0.0
    %1047 = vmatprep.subr.mxu0 0.0
    %1048 = vmatpush1.msra.mxu0 0.0
    %1049 = vmatprep.subr.mxu0 0.0
    %1050 = vmatpush1.msra.mxu0 0.0
    %1051 = vmatprep.subr.mxu0 0.0
    %1052 = vmatpush1.msra.mxu0 0.0
    %1053 = vmatprep.subr.mxu0 0.0
    %1054 = vmatpush1.msra.mxu0 0.0
    %1055 = vmatprep.subr.mxu0 0.0
    %1056 = vmatpush1.msra.mxu0 0.0
    %1057 = vmatprep.subr.mxu0 0.0
    %1058 = vmatpush1.msra.mxu0 0.0
    %1059 = vmatprep.subr.mxu0 0.0
    %1060 = vmatpush1.msra.mxu0 0.0
    %1061 = vmatprep.subr.mxu0 0.0
    %1062 = vmatpush1.msra.mxu0 0.0
    %1063 = vmatprep.mubr.f32.mxu0 0.0
    %1064 = vmatmul.mubr.f32.gmra.mrb[0].mxu0 %v997
    %v1065 = vpop.f32.mrb[0].mxu0
    %v1066 = vadd.f32 0.0, %v1065
    %v1067 = vpop.f32.mrb[0].mxu0
    %1068 = vdwg.mxu0
    %v1069 = vadd.f32 %v991, %v1066
    %v1070 = vxor.u32 %v1069, 2147483648
    %v1071 = vmul.f32 %v1070, 1.442695
    %v1072 = vpow.pop %v1071
    %v1073 = vadd.f32 %v1072, 1.0
    %v1074 = vrcp.pop %v1073
    %v1075 = vmul.f32 1.0, %v1074
    %v1076 = vtanh.pop %v1069
    %v1077 = vmul.f32 %v1075, %v817
    %1079 = vrot.lane.b32.xlu0 %v1076, 32
    %v1080 = vpop.permute.xlu0 %1079
    %v1082 = vmul.f32 %v1075, %v1080
    %1084 = vrot.lane.b32.xlu0 %v1082, 32
    %v1085 = vpop.permute.xlu0 %1084
    %v1087 = vadd.f32 %v1077, %v1085
    %v1088 = vtanh.pop %v1087
    %1090 = vrot.lane.b32.xlu0 %v1088, 32
    %v1091 = vpop.permute.xlu0 %1090
    %v1093 = vmul.f32 %v1075, %v1091
    %1095 = vrot.lane.b32.xlu0 %v923, 64
    %v1096 = vpop.permute.xlu0 %1095
    %v1097 = vsel %vm186, %v1096, 0
    %1099 = vmatprep.subr.mxu0 0.0
    %1100 = vmatpush1.msra.mxu0 %v32
    %1101 = vmatprep.subr.mxu0 0.0
    %1102 = vmatpush1.msra.mxu0 %v33
    %1103 = vmatprep.subr.mxu0 0.0
    %1104 = vmatpush1.msra.mxu0 %v34
    %1105 = vmatprep.subr.mxu0 0.0
    %1106 = vmatpush1.msra.mxu0 %v35
    %1107 = vmatprep.subr.mxu0 0.0
    %1108 = vmatpush1.msra.mxu0 0.0
    %1109 = vmatprep.subr.mxu0 0.0
    %1110 = vmatpush1.msra.mxu0 0.0
    %1111 = vmatprep.subr.mxu0 0.0
    %1112 = vmatpush1.msra.mxu0 0.0
    %1113 = vmatprep.subr.mxu0 0.0
    %1114 = vmatpush1.msra.mxu0 0.0
    %1115 = vmatprep.subr.mxu0 0.0
    %1116 = vmatpush1.msra.mxu0 0.0
    %1117 = vmatprep.subr.mxu0 0.0
    %1118 = vmatpush1.msra.mxu0 0.0
    %1119 = vmatprep.subr.mxu0 0.0
    %1120 = vmatpush1.msra.mxu0 0.0
    %1121 = vmatprep.subr.mxu0 0.0
    %1122 = vmatpush1.msra.mxu0 0.0
    %1123 = vmatprep.subr.mxu0 0.0
    %1124 = vmatpush1.msra.mxu0 0.0
    %1125 = vmatprep.subr.mxu0 0.0
    %1126 = vmatpush1.msra.mxu0 0.0
    %1127 = vmatprep.subr.mxu0 0.0
    %1128 = vmatpush1.msra.mxu0 0.0
    %1129 = vmatprep.subr.mxu0 0.0
    %1130 = vmatpush1.msra.mxu0 0.0
    %1131 = vmatprep.subr.mxu0 0.0
    %1132 = vmatpush1.msra.mxu0 0.0
    %1133 = vmatprep.subr.mxu0 0.0
    %1134 = vmatpush1.msra.mxu0 0.0
    %1135 = vmatprep.subr.mxu0 0.0
    %1136 = vmatpush1.msra.mxu0 0.0
    %1137 = vmatprep.subr.mxu0 0.0
    %1138 = vmatpush1.msra.mxu0 0.0
    %1139 = vmatprep.subr.mxu0 0.0
    %1140 = vmatpush1.msra.mxu0 0.0
    %1141 = vmatprep.subr.mxu0 0.0
    %1142 = vmatpush1.msra.mxu0 0.0
    %1143 = vmatprep.subr.mxu0 0.0
    %1144 = vmatpush1.msra.mxu0 0.0
    %1145 = vmatprep.subr.mxu0 0.0
    %1146 = vmatpush1.msra.mxu0 0.0
    %1147 = vmatprep.subr.mxu0 0.0
    %1148 = vmatpush1.msra.mxu0 0.0
    %1149 = vmatprep.subr.mxu0 0.0
    %1150 = vmatpush1.msra.mxu0 0.0
    %1151 = vmatprep.subr.mxu0 0.0
    %1152 = vmatpush1.msra.mxu0 0.0
    %1153 = vmatprep.subr.mxu0 0.0
    %1154 = vmatpush1.msra.mxu0 0.0
    %1155 = vmatprep.subr.mxu0 0.0
    %1156 = vmatpush1.msra.mxu0 0.0
    %1157 = vmatprep.subr.mxu0 0.0
    %1158 = vmatpush1.msra.mxu0 0.0
    %1159 = vmatprep.subr.mxu0 0.0
    %1160 = vmatpush1.msra.mxu0 0.0
    %1161 = vmatprep.subr.mxu0 0.0
    %1162 = vmatpush1.msra.mxu0 0.0
    %1163 = vmatprep.mubr.f32.mxu0 0.0
    %1164 = vmatmul.mubr.f32.gmra.mrb[0].mxu0 %v1097
    %v1165 = vpop.f32.mrb[0].mxu0
    %v1166 = vadd.f32 0.0, %v1165
    %v1167 = vpop.f32.mrb[0].mxu0
    %1168 = vdwg.mxu0
    %v1169 = vadd.f32 %v168, %v1166
    %v1170 = vxor.u32 %v1169, 2147483648
    %v1171 = vmul.f32 %v1170, 1.442695
    %v1172 = vpow.pop %v1171
    %v1173 = vadd.f32 %v1172, 1.0
    %v1174 = vrcp.pop %v1173
    %v1175 = vmul.f32 1.0, %v1174
    %v1176 = vtanh.pop %v1169
    %v1177 = vmul.f32 %v1175, %v917
    %1179 = vrot.lane.b32.xlu0 %v1176, 32
    %v1180 = vpop.permute.xlu0 %1179
    %v1182 = vmul.f32 %v1175, %v1180
    %1184 = vrot.lane.b32.xlu0 %v1182, 32
    %v1185 = vpop.permute.xlu0 %1184
    %v1187 = vadd.f32 %v1177, %v1185
    %v1188 = vtanh.pop %v1187
    %1190 = vrot.lane.b32.xlu0 %v1188, 32
    %v1191 = vpop.permute.xlu0 %1190
    %v1193 = vmul.f32 %v1175, %v1191
    %1194 = vmatprep.subr.mxu0 0.0
    %1195 = vmatpush1.msra.mxu0 %v36
    %1196 = vmatprep.subr.mxu0 0.0
    %1197 = vmatpush1.msra.mxu0 %v37
    %1198 = vmatprep.subr.mxu0 0.0
    %1199 = vmatpush1.msra.mxu0 %v38
    %1200 = vmatprep.subr.mxu0 0.0
    %1201 = vmatpush1.msra.mxu0 %v39
    %1202 = vmatprep.subr.mxu0 0.0
    %1203 = vmatpush1.msra.mxu0 0.0
    %1204 = vmatprep.subr.mxu0 0.0
    %1205 = vmatpush1.msra.mxu0 0.0
    %1206 = vmatprep.subr.mxu0 0.0
    %1207 = vmatpush1.msra.mxu0 0.0
    %1208 = vmatprep.subr.mxu0 0.0
    %1209 = vmatpush1.msra.mxu0 0.0
    %1210 = vmatprep.subr.mxu0 0.0
    %1211 = vmatpush1.msra.mxu0 0.0
    %1212 = vmatprep.subr.mxu0 0.0
    %1213 = vmatpush1.msra.mxu0 0.0
    %1214 = vmatprep.subr.mxu0 0.0
    %1215 = vmatpush1.msra.mxu0 0.0
    %1216 = vmatprep.subr.mxu0 0.0
    %1217 = vmatpush1.msra.mxu0 0.0
    %1218 = vmatprep.subr.mxu0 0.0
    %1219 = vmatpush1.msra.mxu0 0.0
    %1220 = vmatprep.subr.mxu0 0.0
    %1221 = vmatpush1.msra.mxu0 0.0
    %1222 = vmatprep.subr.mxu0 0.0
    %1223 = vmatpush1.msra.mxu0 0.0
    %1224 = vmatprep.subr.mxu0 0.0
    %1225 = vmatpush1.msra.mxu0 0.0
    %1226 = vmatprep.subr.mxu0 0.0
    %1227 = vmatpush1.msra.mxu0 0.0
    %1228 = vmatprep.subr.mxu0 0.0
    %1229 = vmatpush1.msra.mxu0 0.0
    %1230 = vmatprep.subr.mxu0 0.0
    %1231 = vmatpush1.msra.mxu0 0.0
    %1232 = vmatprep.subr.mxu0 0.0
    %1233 = vmatpush1.msra.mxu0 0.0
    %1234 = vmatprep.subr.mxu0 0.0
    %1235 = vmatpush1.msra.mxu0 0.0
    %1236 = vmatprep.subr.mxu0 0.0
    %1237 = vmatpush1.msra.mxu0 0.0
    %1238 = vmatprep.subr.mxu0 0.0
    %1239 = vmatpush1.msra.mxu0 0.0
    %1240 = vmatprep.subr.mxu0 0.0
    %1241 = vmatpush1.msra.mxu0 0.0
    %1242 = vmatprep.subr.mxu0 0.0
    %1243 = vmatpush1.msra.mxu0 0.0
    %1244 = vmatprep.subr.mxu0 0.0
    %1245 = vmatpush1.msra.mxu0 0.0
    %1246 = vmatprep.subr.mxu0 0.0
    %1247 = vmatpush1.msra.mxu0 0.0
    %1248 = vmatprep.subr.mxu0 0.0
    %1249 = vmatpush1.msra.mxu0 0.0
    %1250 = vmatprep.subr.mxu0 0.0
    %1251 = vmatpush1.msra.mxu0 0.0
    %1252 = vmatprep.subr.mxu0 0.0
    %1253 = vmatpush1.msra.mxu0 0.0
    %1254 = vmatprep.subr.mxu0 0.0
    %1255 = vmatpush1.msra.mxu0 0.0
    %1256 = vmatprep.subr.mxu0 0.0
    %1257 = vmatpush1.msra.mxu0 0.0
    %1258 = vmatprep.mubr.f32.mxu0 0.0
    %1259 = vmatmul.mubr.f32.gmra.mrb[0].mxu0 %v1097
    %v1260 = vpop.f32.mrb[0].mxu0
    %v1261 = vadd.f32 %v388, %v1260
    %v1262 = vpop.f32.mrb[0].mxu0
    %1263 = vdwg.mxu0
    %1265 = vrot.lane.b32.xlu0 %v1093, 64
    %v1266 = vpop.permute.xlu0 %1265
    %v1267 = vsel %vm186, %v1266, 0
    %1269 = vmatprep.subr.mxu0 0.0
    %1270 = vmatpush1.msra.mxu0 %v40
    %1271 = vmatprep.subr.mxu0 0.0
    %1272 = vmatpush1.msra.mxu0 %v41
    %1273 = vmatprep.subr.mxu0 0.0
    %1274 = vmatpush1.msra.mxu0 %v42
    %1275 = vmatprep.subr.mxu0 0.0
    %1276 = vmatpush1.msra.mxu0 %v43
    %1277 = vmatprep.subr.mxu0 0.0
    %1278 = vmatpush1.msra.mxu0 0.0
    %1279 = vmatprep.subr.mxu0 0.0
    %1280 = vmatpush1.msra.mxu0 0.0
    %1281 = vmatprep.subr.mxu0 0.0
    %1282 = vmatpush1.msra.mxu0 0.0
    %1283 = vmatprep.subr.mxu0 0.0
    %1284 = vmatpush1.msra.mxu0 0.0
    %1285 = vmatprep.subr.mxu0 0.0
    %1286 = vmatpush1.msra.mxu0 0.0
    %1287 = vmatprep.subr.mxu0 0.0
    %1288 = vmatpush1.msra.mxu0 0.0
    %1289 = vmatprep.subr.mxu0 0.0
    %1290 = vmatpush1.msra.mxu0 0.0
    %1291 = vmatprep.subr.mxu0 0.0
    %1292 = vmatpush1.msra.mxu0 0.0
    %1293 = vmatprep.subr.mxu0 0.0
    %1294 = vmatpush1.msra.mxu0 0.0
    %1295 = vmatprep.subr.mxu0 0.0
    %1296 = vmatpush1.msra.mxu0 0.0
    %1297 = vmatprep.subr.mxu0 0.0
    %1298 = vmatpush1.msra.mxu0 0.0
    %1299 = vmatprep.subr.mxu0 0.0
    %1300 = vmatpush1.msra.mxu0 0.0
    %1301 = vmatprep.subr.mxu0 0.0
    %1302 = vmatpush1.msra.mxu0 0.0
    %1303 = vmatprep.subr.mxu0 0.0
    %1304 = vmatpush1.msra.mxu0 0.0
    %1305 = vmatprep.subr.mxu0 0.0
    %1306 = vmatpush1.msra.mxu0 0.0
    %1307 = vmatprep.subr.mxu0 0.0
    %1308 = vmatpush1.msra.mxu0 0.0
    %1309 = vmatprep.subr.mxu0 0.0
    %1310 = vmatpush1.msra.mxu0 0.0
    %1311 = vmatprep.subr.mxu0 0.0
    %1312 = vmatpush1.msra.mxu0 0.0
    %1313 = vmatprep.subr.mxu0 0.0
    %1314 = vmatpush1.msra.mxu0 0.0
    %1315 = vmatprep.subr.mxu0 0.0
    %1316 = vmatpush1.msra.mxu0 0.0
    %1317 = vmatprep.subr.mxu0 0.0
    %1318 = vmatpush1.msra.mxu0 0.0
    %1319 = vmatprep.subr.mxu0 0.0
    %1320 = vmatpush1.msra.mxu0 0.0
    %1321 = vmatprep.subr.mxu0 0.0
    %1322 = vmatpush1.msra.mxu0 0.0
    %1323 = vmatprep.subr.mxu0 0.0
    %1324 = vmatpush1.msra.mxu0 0.0
    %1325 = vmatprep.subr.mxu0 0.0
    %1326 = vmatpush1.msra.mxu0 0.0
    %1327 = vmatprep.subr.mxu0 0.0
    %1328 = vmatpush1.msra.mxu0 0.0
    %1329 = vmatprep.subr.mxu0 0.0
    %1330 = vmatpush1.msra.mxu0 0.0
    %1331 = vmatprep.subr.mxu0 0.0
    %1332 = vmatpush1.msra.mxu0 0.0
    %1333 = vmatprep.mubr.f32.mxu0 0.0
    %1334 = vmatmul.mubr.f32.gmra.mrb[0].mxu0 %v1267
    %v1335 = vpop.f32.mrb[0].mxu0
    %v1336 = vadd.f32 0.0, %v1335
    %v1337 = vpop.f32.mrb[0].mxu0
    %1338 = vdwg.mxu0
    %v1339 = vadd.f32 %v1261, %v1336
    %v1340 = vxor.u32 %v1339, 2147483648
    %v1341 = vmul.f32 %v1340, 1.442695
    %v1342 = vpow.pop %v1341
    %v1343 = vadd.f32 %v1342, 1.0
    %v1344 = vrcp.pop %v1343
    %v1345 = vmul.f32 1.0, %v1344
    %v1346 = vtanh.pop %v1339
    %v1347 = vmul.f32 %v1345, %v1087
    %1349 = vrot.lane.b32.xlu0 %v1346, 32
    %v1350 = vpop.permute.xlu0 %1349
    %v1352 = vmul.f32 %v1345, %v1350
    %1354 = vrot.lane.b32.xlu0 %v1352, 32
    %v1355 = vpop.permute.xlu0 %1354
    %v1357 = vadd.f32 %v1347, %v1355
    %v1358 = vtanh.pop %v1357
    %1360 = vrot.lane.b32.xlu0 %v1358, 32
    %v1361 = vpop.permute.xlu0 %1360
    %v1363 = vmul.f32 %v1345, %v1361
    %1365 = vrot.lane.b32.xlu0 %v1193, 64
    %v1366 = vpop.permute.xlu0 %1365
    %v1367 = vsel %vm186, %v1366, 0
    %1369 = vmatprep.subr.mxu0 0.0
    %1370 = vmatpush1.msra.mxu0 %v32
    %1371 = vmatprep.subr.mxu0 0.0
    %1372 = vmatpush1.msra.mxu0 %v33
    %1373 = vmatprep.subr.mxu0 0.0
    %1374 = vmatpush1.msra.mxu0 %v34
    %1375 = vmatprep.subr.mxu0 0.0
    %1376 = vmatpush1.msra.mxu0 %v35
    %1377 = vmatprep.subr.mxu0 0.0
    %1378 = vmatpush1.msra.mxu0 0.0
    %1379 = vmatprep.subr.mxu0 0.0
    %1380 = vmatpush1.msra.mxu0 0.0
    %1381 = vmatprep.subr.mxu0 0.0
    %1382 = vmatpush1.msra.mxu0 0.0
    %1383 = vmatprep.subr.mxu0 0.0
    %1384 = vmatpush1.msra.mxu0 0.0
    %1385 = vmatprep.subr.mxu0 0.0
    %1386 = vmatpush1.msra.mxu0 0.0
    %1387 = vmatprep.subr.mxu0 0.0
    %1388 = vmatpush1.msra.mxu0 0.0
    %1389 = vmatprep.subr.mxu0 0.0
    %1390 = vmatpush1.msra.mxu0 0.0
    %1391 = vmatprep.subr.mxu0 0.0
    %1392 = vmatpush1.msra.mxu0 0.0
    %1393 = vmatprep.subr.mxu0 0.0
    %1394 = vmatpush1.msra.mxu0 0.0
    %1395 = vmatprep.subr.mxu0 0.0
    %1396 = vmatpush1.msra.mxu0 0.0
    %1397 = vmatprep.subr.mxu0 0.0
    %1398 = vmatpush1.msra.mxu0 0.0
    %1399 = vmatprep.subr.mxu0 0.0
    %1400 = vmatpush1.msra.mxu0 0.0
    %1401 = vmatprep.subr.mxu0 0.0
    %1402 = vmatpush1.msra.mxu0 0.0
    %1403 = vmatprep.subr.mxu0 0.0
    %1404 = vmatpush1.msra.mxu0 0.0
    %1405 = vmatprep.subr.mxu0 0.0
    %1406 = vmatpush1.msra.mxu0 0.0
    %1407 = vmatprep.subr.mxu0 0.0
    %1408 = vmatpush1.msra.mxu0 0.0
    %1409 = vmatprep.subr.mxu0 0.0
    %1410 = vmatpush1.msra.mxu0 0.0
    %1411 = vmatprep.subr.mxu0 0.0
    %1412 = vmatpush1.msra.mxu0 0.0
    %1413 = vmatprep.subr.mxu0 0.0
    %1414 = vmatpush1.msra.mxu0 0.0
    %1415 = vmatprep.subr.mxu0 0.0
    %1416 = vmatpush1.msra.mxu0 0.0
    %1417 = vmatprep.subr.mxu0 0.0
    %1418 = vmatpush1.msra.mxu0 0.0
    %1419 = vmatprep.subr.mxu0 0.0
    %1420 = vmatpush1.msra.mxu0 0.0
    %1421 = vmatprep.subr.mxu0 0.0
    %1422 = vmatpush1.msra.mxu0 0.0
    %1423 = vmatprep.subr.mxu0 0.0
    %1424 = vmatpush1.msra.mxu0 0.0
    %1425 = vmatprep.subr.mxu0 0.0
    %1426 = vmatpush1.msra.mxu0 0.0
    %1427 = vmatprep.subr.mxu0 0.0
    %1428 = vmatpush1.msra.mxu0 0.0
    %1429 = vmatprep.subr.mxu0 0.0
    %1430 = vmatpush1.msra.mxu0 0.0
    %1431 = vmatprep.subr.mxu0 0.0
    %1432 = vmatpush1.msra.mxu0 0.0
    %1433 = vmatprep.mubr.f32.mxu0 0.0
    %1434 = vmatmul.mubr.f32.gmra.mrb[0].mxu0 %v1367
    %v1435 = vpop.f32.mrb[0].mxu0
    %v1436 = vadd.f32 0.0, %v1435
    %v1437 = vpop.f32.mrb[0].mxu0
    %1438 = vdwg.mxu0
    %v1439 = vadd.f32 %v173, %v1436
    %v1440 = vxor.u32 %v1439, 2147483648
    %v1441 = vmul.f32 %v1440, 1.442695
    %v1442 = vpow.pop %v1441
    %v1443 = vadd.f32 %v1442, 1.0
    %v1444 = vrcp.pop %v1443
    %v1445 = vmul.f32 1.0, %v1444
    %v1446 = vtanh.pop %v1439
    %v1447 = vmul.f32 %v1445, %v1187
    %1449 = vrot.lane.b32.xlu0 %v1446, 32
    %v1450 = vpop.permute.xlu0 %1449
    %v1452 = vmul.f32 %v1445, %v1450
    %1454 = vrot.lane.b32.xlu0 %v1452, 32
    %v1455 = vpop.permute.xlu0 %1454
    %v1457 = vadd.f32 %v1447, %v1455
    %v1458 = vtanh.pop %v1457
    %1460 = vrot.lane.b32.xlu0 %v1458, 32
    %v1461 = vpop.permute.xlu0 %1460
    %v1463 = vmul.f32 %v1445, %v1461
    %1464 = vmatprep.subr.mxu0 0.0
    %1465 = vmatpush1.msra.mxu0 %v36
    %1466 = vmatprep.subr.mxu0 0.0
    %1467 = vmatpush1.msra.mxu0 %v37
    %1468 = vmatprep.subr.mxu0 0.0
    %1469 = vmatpush1.msra.mxu0 %v38
    %1470 = vmatprep.subr.mxu0 0.0
    %1471 = vmatpush1.msra.mxu0 %v39
    %1472 = vmatprep.subr.mxu0 0.0
    %1473 = vmatpush1.msra.mxu0 0.0
    %1474 = vmatprep.subr.mxu0 0.0
    %1475 = vmatpush1.msra.mxu0 0.0
    %1476 = vmatprep.subr.mxu0 0.0
    %1477 = vmatpush1.msra.mxu0 0.0
    %1478 = vmatprep.subr.mxu0 0.0
    %1479 = vmatpush1.msra.mxu0 0.0
    %1480 = vmatprep.subr.mxu0 0.0
    %1481 = vmatpush1.msra.mxu0 0.0
    %1482 = vmatprep.subr.mxu0 0.0
    %1483 = vmatpush1.msra.mxu0 0.0
    %1484 = vmatprep.subr.mxu0 0.0
    %1485 = vmatpush1.msra.mxu0 0.0
    %1486 = vmatprep.subr.mxu0 0.0
    %1487 = vmatpush1.msra.mxu0 0.0
    %1488 = vmatprep.subr.mxu0 0.0
    %1489 = vmatpush1.msra.mxu0 0.0
    %1490 = vmatprep.subr.mxu0 0.0
    %1491 = vmatpush1.msra.mxu0 0.0
    %1492 = vmatprep.subr.mxu0 0.0
    %1493 = vmatpush1.msra.mxu0 0.0
    %1494 = vmatprep.subr.mxu0 0.0
    %1495 = vmatpush1.msra.mxu0 0.0
    %1496 = vmatprep.subr.mxu0 0.0
    %1497 = vmatpush1.msra.mxu0 0.0
    %1498 = vmatprep.subr.mxu0 0.0
    %1499 = vmatpush1.msra.mxu0 0.0
    %1500 = vmatprep.subr.mxu0 0.0
    %1501 = vmatpush1.msra.mxu0 0.0
    %1502 = vmatprep.subr.mxu0 0.0
    %1503 = vmatpush1.msra.mxu0 0.0
    %1504 = vmatprep.subr.mxu0 0.0
    %1505 = vmatpush1.msra.mxu0 0.0
    %1506 = vmatprep.subr.mxu0 0.0
    %1507 = vmatpush1.msra.mxu0 0.0
    %1508 = vmatprep.subr.mxu0 0.0
    %1509 = vmatpush1.msra.mxu0 0.0
    %1510 = vmatprep.subr.mxu0 0.0
    %1511 = vmatpush1.msra.mxu0 0.0
    %1512 = vmatprep.subr.mxu0 0.0
    %1513 = vmatpush1.msra.mxu0 0.0
    %1514 = vmatprep.subr.mxu0 0.0
    %1515 = vmatpush1.msra.mxu0 0.0
    %1516 = vmatprep.subr.mxu0 0.0
    %1517 = vmatpush1.msra.mxu0 0.0
    %1518 = vmatprep.subr.mxu0 0.0
    %1519 = vmatpush1.msra.mxu0 0.0
    %1520 = vmatprep.subr.mxu0 0.0
    %1521 = vmatpush1.msra.mxu0 0.0
    %1522 = vmatprep.subr.mxu0 0.0
    %1523 = vmatpush1.msra.mxu0 0.0
    %1524 = vmatprep.subr.mxu0 0.0
    %1525 = vmatpush1.msra.mxu0 0.0
    %1526 = vmatprep.subr.mxu0 0.0
    %1527 = vmatpush1.msra.mxu0 0.0
    %1528 = vmatprep.mubr.f32.mxu0 0.0
    %1529 = vmatmul.mubr.f32.gmra.mrb[0].mxu0 %v1367
    %v1530 = vpop.f32.mrb[0].mxu0
    %v1531 = vadd.f32 %v388, %v1530
    %v1532 = vpop.f32.mrb[0].mxu0
    %1533 = vdwg.mxu0
    %1535 = vrot.lane.b32.xlu0 %v1363, 64
    %v1536 = vpop.permute.xlu0 %1535
    %v1537 = vsel %vm186, %v1536, 0
    %1539 = vmatprep.subr.mxu0 0.0
    %1540 = vmatpush1.msra.mxu0 %v40
    %1541 = vmatprep.subr.mxu0 0.0
    %1542 = vmatpush1.msra.mxu0 %v41
    %1543 = vmatprep.subr.mxu0 0.0
    %1544 = vmatpush1.msra.mxu0 %v42
    %1545 = vmatprep.subr.mxu0 0.0
    %1546 = vmatpush1.msra.mxu0 %v43
    %1547 = vmatprep.subr.mxu0 0.0
    %1548 = vmatpush1.msra.mxu0 0.0
    %1549 = vmatprep.subr.mxu0 0.0
    %1550 = vmatpush1.msra.mxu0 0.0
    %1551 = vmatprep.subr.mxu0 0.0
    %1552 = vmatpush1.msra.mxu0 0.0
    %1553 = vmatprep.subr.mxu0 0.0
    %1554 = vmatpush1.msra.mxu0 0.0
    %1555 = vmatprep.subr.mxu0 0.0
    %1556 = vmatpush1.msra.mxu0 0.0
    %1557 = vmatprep.subr.mxu0 0.0
    %1558 = vmatpush1.msra.mxu0 0.0
    %1559 = vmatprep.subr.mxu0 0.0
    %1560 = vmatpush1.msra.mxu0 0.0
    %1561 = vmatprep.subr.mxu0 0.0
    %1562 = vmatpush1.msra.mxu0 0.0
    %1563 = vmatprep.subr.mxu0 0.0
    %1564 = vmatpush1.msra.mxu0 0.0
    %1565 = vmatprep.subr.mxu0 0.0
    %1566 = vmatpush1.msra.mxu0 0.0
    %1567 = vmatprep.subr.mxu0 0.0
    %1568 = vmatpush1.msra.mxu0 0.0
    %1569 = vmatprep.subr.mxu0 0.0
    %1570 = vmatpush1.msra.mxu0 0.0
    %1571 = vmatprep.subr.mxu0 0.0
    %1572 = vmatpush1.msra.mxu0 0.0
    %1573 = vmatprep.subr.mxu0 0.0
    %1574 = vmatpush1.msra.mxu0 0.0
    %1575 = vmatprep.subr.mxu0 0.0
    %1576 = vmatpush1.msra.mxu0 0.0
    %1577 = vmatprep.subr.mxu0 0.0
    %1578 = vmatpush1.msra.mxu0 0.0
    %1579 = vmatprep.subr.mxu0 0.0
    %1580 = vmatpush1.msra.mxu0 0.0
    %1581 = vmatprep.subr.mxu0 0.0
    %1582 = vmatpush1.msra.mxu0 0.0
    %1583 = vmatprep.subr.mxu0 0.0
    %1584 = vmatpush1.msra.mxu0 0.0
    %1585 = vmatprep.subr.mxu0 0.0
    %1586 = vmatpush1.msra.mxu0 0.0
    %1587 = vmatprep.subr.mxu0 0.0
    %1588 = vmatpush1.msra.mxu0 0.0
    %1589 = vmatprep.subr.mxu0 0.0
    %1590 = vmatpush1.msra.mxu0 0.0
    %1591 = vmatprep.subr.mxu0 0.0
    %1592 = vmatpush1.msra.mxu0 0.0
    %1593 = vmatprep.subr.mxu0 0.0
    %1594 = vmatpush1.msra.mxu0 0.0
    %1595 = vmatprep.subr.mxu0 0.0
    %1596 = vmatpush1.msra.mxu0 0.0
    %1597 = vmatprep.subr.mxu0 0.0
    %1598 = vmatpush1.msra.mxu0 0.0
    %1599 = vmatprep.subr.mxu0 0.0
    %1600 = vmatpush1.msra.mxu0 0.0
    %1601 = vmatprep.subr.mxu0 0.0
    %1602 = vmatpush1.msra.mxu0 0.0
    %1603 = vmatprep.mubr.f32.mxu0 0.0
    %1604 = vmatmul.mubr.f32.gmra.mrb[0].mxu0 %v1537
    %v1605 = vpop.f32.mrb[0].mxu0
    %v1606 = vadd.f32 0.0, %v1605
    %v1607 = vpop.f32.mrb[0].mxu0
    %1608 = vdwg.mxu0
    %v1609 = vadd.f32 %v1531, %v1606
    %v1610 = vxor.u32 %v1609, 2147483648
    %v1611 = vmul.f32 %v1610, 1.442695
    %v1612 = vpow.pop %v1611
    %v1613 = vadd.f32 %v1612, 1.0
    %v1614 = vrcp.pop %v1613
    %v1615 = vmul.f32 1.0, %v1614
    %v1616 = vtanh.pop %v1609
    %v1617 = vmul.f32 %v1615, %v1357
    %1619 = vrot.lane.b32.xlu0 %v1616, 32
    %v1620 = vpop.permute.xlu0 %1619
    %v1622 = vmul.f32 %v1615, %v1620
    %1624 = vrot.lane.b32.xlu0 %v1622, 32
    %v1625 = vpop.permute.xlu0 %1624
    %v1627 = vadd.f32 %v1617, %v1625
    %v1628 = vtanh.pop %v1627
    %1630 = vrot.lane.b32.xlu0 %v1628, 32
    %v1631 = vpop.permute.xlu0 %1630
    %v1633 = vmul.f32 %v1615, %v1631
    %1635 = vrot.lane.b32.xlu0 %v1463, 64
    %v1636 = vpop.permute.xlu0 %1635
    %v1637 = vsel %vm186, %v1636, 0
    %1639 = vmatprep.subr.mxu0 0.0
    %1640 = vmatpush1.msra.mxu0 %v32
    %1641 = vmatprep.subr.mxu0 0.0
    %1642 = vmatpush1.msra.mxu0 %v33
    %1643 = vmatprep.subr.mxu0 0.0
    %1644 = vmatpush1.msra.mxu0 %v34
    %1645 = vmatprep.subr.mxu0 0.0
    %1646 = vmatpush1.msra.mxu0 %v35
    %1647 = vmatprep.subr.mxu0 0.0
    %1648 = vmatpush1.msra.mxu0 0.0
    %1649 = vmatprep.subr.mxu0 0.0
    %1650 = vmatpush1.msra.mxu0 0.0
    %1651 = vmatprep.subr.mxu0 0.0
    %1652 = vmatpush1.msra.mxu0 0.0
    %1653 = vmatprep.subr.mxu0 0.0
    %1654 = vmatpush1.msra.mxu0 0.0
    %1655 = vmatprep.subr.mxu0 0.0
    %1656 = vmatpush1.msra.mxu0 0.0
    %1657 = vmatprep.subr.mxu0 0.0
    %1658 = vmatpush1.msra.mxu0 0.0
    %1659 = vmatprep.subr.mxu0 0.0
    %1660 = vmatpush1.msra.mxu0 0.0
    %1661 = vmatprep.subr.mxu0 0.0
    %1662 = vmatpush1.msra.mxu0 0.0
    %1663 = vmatprep.subr.mxu0 0.0
    %1664 = vmatpush1.msra.mxu0 0.0
    %1665 = vmatprep.subr.mxu0 0.0
    %1666 = vmatpush1.msra.mxu0 0.0
    %1667 = vmatprep.subr.mxu0 0.0
    %1668 = vmatpush1.msra.mxu0 0.0
    %1669 = vmatprep.subr.mxu0 0.0
    %1670 = vmatpush1.msra.mxu0 0.0
    %1671 = vmatprep.subr.mxu0 0.0
    %1672 = vmatpush1.msra.mxu0 0.0
    %1673 = vmatprep.subr.mxu0 0.0
    %1674 = vmatpush1.msra.mxu0 0.0
    %1675 = vmatprep.subr.mxu0 0.0
    %1676 = vmatpush1.msra.mxu0 0.0
    %1677 = vmatprep.subr.mxu0 0.0
    %1678 = vmatpush1.msra.mxu0 0.0
    %1679 = vmatprep.subr.mxu0 0.0
    %1680 = vmatpush1.msra.mxu0 0.0
    %1681 = vmatprep.subr.mxu0 0.0
    %1682 = vmatpush1.msra.mxu0 0.0
    %1683 = vmatprep.subr.mxu0 0.0
    %1684 = vmatpush1.msra.mxu0 0.0
    %1685 = vmatprep.subr.mxu0 0.0
    %1686 = vmatpush1.msra.mxu0 0.0
    %1687 = vmatprep.subr.mxu0 0.0
    %1688 = vmatpush1.msra.mxu0 0.0
    %1689 = vmatprep.subr.mxu0 0.0
    %1690 = vmatpush1.msra.mxu0 0.0
    %1691 = vmatprep.subr.mxu0 0.0
    %1692 = vmatpush1.msra.mxu0 0.0
    %1693 = vmatprep.subr.mxu0 0.0
    %1694 = vmatpush1.msra.mxu0 0.0
    %1695 = vmatprep.subr.mxu0 0.0
    %1696 = vmatpush1.msra.mxu0 0.0
    %1697 = vmatprep.subr.mxu0 0.0
    %1698 = vmatpush1.msra.mxu0 0.0
    %1699 = vmatprep.subr.mxu0 0.0
    %1700 = vmatpush1.msra.mxu0 0.0
    %1701 = vmatprep.subr.mxu0 0.0
    %1702 = vmatpush1.msra.mxu0 0.0
    %1703 = vmatprep.mubr.f32.mxu0 0.0
    %1704 = vmatmul.mubr.f32.gmra.mrb[0].mxu0 %v1637
    %v1705 = vpop.f32.mrb[0].mxu0
    %v1706 = vadd.f32 0.0, %v1705
    %v1707 = vpop.f32.mrb[0].mxu0
    %1708 = vdwg.mxu0
    %v1709 = vadd.f32 %v178, %v1706
    %v1710 = vxor.u32 %v1709, 2147483648
    %v1711 = vmul.f32 %v1710, 1.442695
    %v1712 = vpow.pop %v1711
    %v1713 = vadd.f32 %v1712, 1.0
    %v1714 = vrcp.pop %v1713
    %v1715 = vmul.f32 1.0, %v1714
    %v1716 = vtanh.pop %v1709
    %v1717 = vmul.f32 %v1715, %v1457
    %1719 = vrot.lane.b32.xlu0 %v1716, 32
    %v1720 = vpop.permute.xlu0 %1719
    %v1722 = vmul.f32 %v1715, %v1720
    %1724 = vrot.lane.b32.xlu0 %v1722, 32
    %v1725 = vpop.permute.xlu0 %1724
    %v1727 = vadd.f32 %v1717, %v1725
    %v1728 = vtanh.pop %v1727
    %1730 = vrot.lane.b32.xlu0 %v1728, 32
    %v1731 = vpop.permute.xlu0 %1730
    %v1733 = vmul.f32 %v1715, %v1731
    %1734 = vmatprep.subr.mxu0 0.0
    %1735 = vmatpush1.msra.mxu0 %v36
    %1736 = vmatprep.subr.mxu0 0.0
    %1737 = vmatpush1.msra.mxu0 %v37
    %1738 = vmatprep.subr.mxu0 0.0
    %1739 = vmatpush1.msra.mxu0 %v38
    %1740 = vmatprep.subr.mxu0 0.0
    %1741 = vmatpush1.msra.mxu0 %v39
    %1742 = vmatprep.subr.mxu0 0.0
    %1743 = vmatpush1.msra.mxu0 0.0
    %1744 = vmatprep.subr.mxu0 0.0
    %1745 = vmatpush1.msra.mxu0 0.0
    %1746 = vmatprep.subr.mxu0 0.0
    %1747 = vmatpush1.msra.mxu0 0.0
    %1748 = vmatprep.subr.mxu0 0.0
    %1749 = vmatpush1.msra.mxu0 0.0
    %1750 = vmatprep.subr.mxu0 0.0
    %1751 = vmatpush1.msra.mxu0 0.0
    %1752 = vmatprep.subr.mxu0 0.0
    %1753 = vmatpush1.msra.mxu0 0.0
    %1754 = vmatprep.subr.mxu0 0.0
    %1755 = vmatpush1.msra.mxu0 0.0
    %1756 = vmatprep.subr.mxu0 0.0
    %1757 = vmatpush1.msra.mxu0 0.0
    %1758 = vmatprep.subr.mxu0 0.0
    %1759 = vmatpush1.msra.mxu0 0.0
    %1760 = vmatprep.subr.mxu0 0.0
    %1761 = vmatpush1.msra.mxu0 0.0
    %1762 = vmatprep.subr.mxu0 0.0
    %1763 = vmatpush1.msra.mxu0 0.0
    %1764 = vmatprep.subr.mxu0 0.0
    %1765 = vmatpush1.msra.mxu0 0.0
    %1766 = vmatprep.subr.mxu0 0.0
    %1767 = vmatpush1.msra.mxu0 0.0
    %1768 = vmatprep.subr.mxu0 0.0
    %1769 = vmatpush1.msra.mxu0 0.0
    %1770 = vmatprep.subr.mxu0 0.0
    %1771 = vmatpush1.msra.mxu0 0.0
    %1772 = vmatprep.subr.mxu0 0.0
    %1773 = vmatpush1.msra.mxu0 0.0
    %1774 = vmatprep.subr.mxu0 0.0
    %1775 = vmatpush1.msra.mxu0 0.0
    %1776 = vmatprep.subr.mxu0 0.0
    %1777 = vmatpush1.msra.mxu0 0.0
    %1778 = vmatprep.subr.mxu0 0.0
    %1779 = vmatpush1.msra.mxu0 0.0
    %1780 = vmatprep.subr.mxu0 0.0
    %1781 = vmatpush1.msra.mxu0 0.0
    %1782 = vmatprep.subr.mxu0 0.0
    %1783 = vmatpush1.msra.mxu0 0.0
    %1784 = vmatprep.subr.mxu0 0.0
    %1785 = vmatpush1.msra.mxu0 0.0
    %1786 = vmatprep.subr.mxu0 0.0
    %1787 = vmatpush1.msra.mxu0 0.0
    %1788 = vmatprep.subr.mxu0 0.0
    %1789 = vmatpush1.msra.mxu0 0.0
    %1790 = vmatprep.subr.mxu0 0.0
    %1791 = vmatpush1.msra.mxu0 0.0
    %1792 = vmatprep.subr.mxu0 0.0
    %1793 = vmatpush1.msra.mxu0 0.0
    %1794 = vmatprep.subr.mxu0 0.0
    %1795 = vmatpush1.msra.mxu0 0.0
    %1796 = vmatprep.subr.mxu0 0.0
    %1797 = vmatpush1.msra.mxu0 0.0
    %1798 = vmatprep.mubr.f32.mxu0 0.0
    %1799 = vmatmul.mubr.f32.gmra.mrb[0].mxu0 %v1637
    %v1800 = vpop.f32.mrb[0].mxu0
    %v1801 = vadd.f32 %v388, %v1800
    %v1802 = vpop.f32.mrb[0].mxu0
    %1803 = vdwg.mxu0
    %1805 = vrot.lane.b32.xlu0 %v1633, 64
    %v1806 = vpop.permute.xlu0 %1805
    %v1807 = vsel %vm186, %v1806, 0
    %1809 = vmatprep.subr.mxu0 0.0
    %1810 = vmatpush1.msra.mxu0 %v40
    %1811 = vmatprep.subr.mxu0 0.0
    %1812 = vmatpush1.msra.mxu0 %v41
    %1813 = vmatprep.subr.mxu0 0.0
    %1814 = vmatpush1.msra.mxu0 %v42
    %1815 = vmatprep.subr.mxu0 0.0
    %1816 = vmatpush1.msra.mxu0 %v43
    %1817 = vmatprep.subr.mxu0 0.0
    %1818 = vmatpush1.msra.mxu0 0.0
    %1819 = vmatprep.subr.mxu0 0.0
    %1820 = vmatpush1.msra.mxu0 0.0
    %1821 = vmatprep.subr.mxu0 0.0
    %1822 = vmatpush1.msra.mxu0 0.0
    %1823 = vmatprep.subr.mxu0 0.0
    %1824 = vmatpush1.msra.mxu0 0.0
    %1825 = vmatprep.subr.mxu0 0.0
    %1826 = vmatpush1.msra.mxu0 0.0
    %1827 = vmatprep.subr.mxu0 0.0
    %1828 = vmatpush1.msra.mxu0 0.0
    %1829 = vmatprep.subr.mxu0 0.0
    %1830 = vmatpush1.msra.mxu0 0.0
    %1831 = vmatprep.subr.mxu0 0.0
    %1832 = vmatpush1.msra.mxu0 0.0
    %1833 = vmatprep.subr.mxu0 0.0
    %1834 = vmatpush1.msra.mxu0 0.0
    %1835 = vmatprep.subr.mxu0 0.0
    %1836 = vmatpush1.msra.mxu0 0.0
    %1837 = vmatprep.subr.mxu0 0.0
    %1838 = vmatpush1.msra.mxu0 0.0
    %1839 = vmatprep.subr.mxu0 0.0
    %1840 = vmatpush1.msra.mxu0 0.0
    %1841 = vmatprep.subr.mxu0 0.0
    %1842 = vmatpush1.msra.mxu0 0.0
    %1843 = vmatprep.subr.mxu0 0.0
    %1844 = vmatpush1.msra.mxu0 0.0
    %1845 = vmatprep.subr.mxu0 0.0
    %1846 = vmatpush1.msra.mxu0 0.0
    %1847 = vmatprep.subr.mxu0 0.0
    %1848 = vmatpush1.msra.mxu0 0.0
    %1849 = vmatprep.subr.mxu0 0.0
    %1850 = vmatpush1.msra.mxu0 0.0
    %1851 = vmatprep.subr.mxu0 0.0
    %1852 = vmatpush1.msra.mxu0 0.0
    %1853 = vmatprep.subr.mxu0 0.0
    %1854 = vmatpush1.msra.mxu0 0.0
    %1855 = vmatprep.subr.mxu0 0.0
    %1856 = vmatpush1.msra.mxu0 0.0
    %1857 = vmatprep.subr.mxu0 0.0
    %1858 = vmatpush1.msra.mxu0 0.0
    %1859 = vmatprep.subr.mxu0 0.0
    %1860 = vmatpush1.msra.mxu0 0.0
    %1861 = vmatprep.subr.mxu0 0.0
    %1862 = vmatpush1.msra.mxu0 0.0
    %1863 = vmatprep.subr.mxu0 0.0
    %1864 = vmatpush1.msra.mxu0 0.0
    %1865 = vmatprep.subr.mxu0 0.0
    %1866 = vmatpush1.msra.mxu0 0.0
    %1867 = vmatprep.subr.mxu0 0.0
    %1868 = vmatpush1.msra.mxu0 0.0
    %1869 = vmatprep.subr.mxu0 0.0
    %1870 = vmatpush1.msra.mxu0 0.0
    %1871 = vmatprep.subr.mxu0 0.0
    %1872 = vmatpush1.msra.mxu0 0.0
    %1873 = vmatprep.mubr.f32.mxu0 0.0
    %1874 = vmatmul.mubr.f32.gmra.mrb[0].mxu0 %v1807
    %v1875 = vpop.f32.mrb[0].mxu0
    %v1876 = vadd.f32 0.0, %v1875
    %v1877 = vpop.f32.mrb[0].mxu0
    %1878 = vdwg.mxu0
    %v1879 = vadd.f32 %v1801, %v1876
    %v1880 = vxor.u32 %v1879, 2147483648
    %v1881 = vmul.f32 %v1880, 1.442695
    %v1882 = vpow.pop %v1881
    %v1883 = vadd.f32 %v1882, 1.0
    %v1884 = vrcp.pop %v1883
    %v1885 = vmul.f32 1.0, %v1884
    %v1886 = vtanh.pop %v1879
    %v1887 = vmul.f32 %v1885, %v1627
    %1889 = vrot.lane.b32.xlu0 %v1886, 32
    %v1890 = vpop.permute.xlu0 %1889
    %v1892 = vmul.f32 %v1885, %v1890
    %1894 = vrot.lane.b32.xlu0 %v1892, 32
    %v1895 = vpop.permute.xlu0 %1894
    %v1897 = vadd.f32 %v1887, %v1895
    %v1898 = vtanh.pop %v1897
    %1900 = vrot.lane.b32.xlu0 %v1898, 32
    %v1901 = vpop.permute.xlu0 %1900
    %v1903 = vmul.f32 %v1885, %v1901
    %1905 = vrot.lane.b32.xlu0 %v1733, 64
    %v1906 = vpop.permute.xlu0 %1905
    %v1907 = vsel %vm186, %v1906, 0
    %1909 = vmatprep.subr.mxu0 0.0
    %1910 = vmatpush1.msra.mxu0 %v32
    %1911 = vmatprep.subr.mxu0 0.0
    %1912 = vmatpush1.msra.mxu0 %v33
    %1913 = vmatprep.subr.mxu0 0.0
    %1914 = vmatpush1.msra.mxu0 %v34
    %1915 = vmatprep.subr.mxu0 0.0
    %1916 = vmatpush1.msra.mxu0 %v35
    %1917 = vmatprep.subr.mxu0 0.0
    %1918 = vmatpush1.msra.mxu0 0.0
    %1919 = vmatprep.subr.mxu0 0.0
    %1920 = vmatpush1.msra.mxu0 0.0
    %1921 = vmatprep.subr.mxu0 0.0
    %1922 = vmatpush1.msra.mxu0 0.0
    %1923 = vmatprep.subr.mxu0 0.0
    %1924 = vmatpush1.msra.mxu0 0.0
    %1925 = vmatprep.subr.mxu0 0.0
    %1926 = vmatpush1.msra.mxu0 0.0
    %1927 = vmatprep.subr.mxu0 0.0
    %1928 = vmatpush1.msra.mxu0 0.0
    %1929 = vmatprep.subr.mxu0 0.0
    %1930 = vmatpush1.msra.mxu0 0.0
    %1931 = vmatprep.subr.mxu0 0.0
    %1932 = vmatpush1.msra.mxu0 0.0
    %1933 = vmatprep.subr.mxu0 0.0
    %1934 = vmatpush1.msra.mxu0 0.0
    %1935 = vmatprep.subr.mxu0 0.0
    %1936 = vmatpush1.msra.mxu0 0.0
    %1937 = vmatprep.subr.mxu0 0.0
    %1938 = vmatpush1.msra.mxu0 0.0
    %1939 = vmatprep.subr.mxu0 0.0
    %1940 = vmatpush1.msra.mxu0 0.0
    %1941 = vmatprep.subr.mxu0 0.0
    %1942 = vmatpush1.msra.mxu0 0.0
    %1943 = vmatprep.subr.mxu0 0.0
    %1944 = vmatpush1.msra.mxu0 0.0
    %1945 = vmatprep.subr.mxu0 0.0
    %1946 = vmatpush1.msra.mxu0 0.0
    %1947 = vmatprep.subr.mxu0 0.0
    %1948 = vmatpush1.msra.mxu0 0.0
    %1949 = vmatprep.subr.mxu0 0.0
    %1950 = vmatpush1.msra.mxu0 0.0
    %1951 = vmatprep.subr.mxu0 0.0
    %1952 = vmatpush1.msra.mxu0 0.0
    %1953 = vmatprep.subr.mxu0 0.0
    %1954 = vmatpush1.msra.mxu0 0.0
    %1955 = vmatprep.subr.mxu0 0.0
    %1956 = vmatpush1.msra.mxu0 0.0
    %1957 = vmatprep.subr.mxu0 0.0
    %1958 = vmatpush1.msra.mxu0 0.0
    %1959 = vmatprep.subr.mxu0 0.0
    %1960 = vmatpush1.msra.mxu0 0.0
    %1961 = vmatprep.subr.mxu0 0.0
    %1962 = vmatpush1.msra.mxu0 0.0
    %1963 = vmatprep.subr.mxu0 0.0
    %1964 = vmatpush1.msra.mxu0 0.0
    %1965 = vmatprep.subr.mxu0 0.0
    %1966 = vmatpush1.msra.mxu0 0.0
    %1967 = vmatprep.subr.mxu0 0.0
    %1968 = vmatpush1.msra.mxu0 0.0
    %1969 = vmatprep.subr.mxu0 0.0
    %1970 = vmatpush1.msra.mxu0 0.0
    %1971 = vmatprep.subr.mxu0 0.0
    %1972 = vmatpush1.msra.mxu0 0.0
    %1973 = vmatprep.mubr.f32.mxu0 0.0
    %1974 = vmatmul.mubr.f32.gmra.mrb[0].mxu0 %v1907
    %v1975 = vpop.f32.mrb[0].mxu0
    %v1976 = vadd.f32 0.0, %v1975
    %v1977 = vpop.f32.mrb[0].mxu0
    %1978 = vdwg.mxu0
    %v1979 = vadd.f32 %v183, %v1976
    %v1980 = vxor.u32 %v1979, 2147483648
    %v1981 = vmul.f32 %v1980, 1.442695
    %v1982 = vpow.pop %v1981
    %v1983 = vadd.f32 %v1982, 1.0
    %v1984 = vrcp.pop %v1983
    %v1985 = vmul.f32 1.0, %v1984
    %v1986 = vtanh.pop %v1979
    %v1987 = vmul.f32 %v1985, %v1727
    %1989 = vrot.lane.b32.xlu0 %v1986, 32
    %v1990 = vpop.permute.xlu0 %1989
    %v1992 = vmul.f32 %v1985, %v1990
    %1994 = vrot.lane.b32.xlu0 %v1992, 32
    %v1995 = vpop.permute.xlu0 %1994
    %v1997 = vadd.f32 %v1987, %v1995
    %v1998 = vtanh.pop %v1997
    %2000 = vrot.lane.b32.xlu0 %v1998, 32
    %v2001 = vpop.permute.xlu0 %2000
    %v2003 = vmul.f32 %v1985, %v2001
    %2004 = vmatprep.subr.mxu0 0.0
    %2005 = vmatpush1.msra.mxu0 %v36
    %2006 = vmatprep.subr.mxu0 0.0
    %2007 = vmatpush1.msra.mxu0 %v37
    %2008 = vmatprep.subr.mxu0 0.0
    %2009 = vmatpush1.msra.mxu0 %v38
    %2010 = vmatprep.subr.mxu0 0.0
    %2011 = vmatpush1.msra.mxu0 %v39
    %2012 = vmatprep.subr.mxu0 0.0
    %2013 = vmatpush1.msra.mxu0 0.0
    %2014 = vmatprep.subr.mxu0 0.0
    %2015 = vmatpush1.msra.mxu0 0.0
    %2016 = vmatprep.subr.mxu0 0.0
    %2017 = vmatpush1.msra.mxu0 0.0
    %2018 = vmatprep.subr.mxu0 0.0
    %2019 = vmatpush1.msra.mxu0 0.0
    %2020 = vmatprep.subr.mxu0 0.0
    %2021 = vmatpush1.msra.mxu0 0.0
    %2022 = vmatprep.subr.mxu0 0.0
    %2023 = vmatpush1.msra.mxu0 0.0
    %2024 = vmatprep.subr.mxu0 0.0
    %2025 = vmatpush1.msra.mxu0 0.0
    %2026 = vmatprep.subr.mxu0 0.0
    %2027 = vmatpush1.msra.mxu0 0.0
    %2028 = vmatprep.subr.mxu0 0.0
    %2029 = vmatpush1.msra.mxu0 0.0
    %2030 = vmatprep.subr.mxu0 0.0
    %2031 = vmatpush1.msra.mxu0 0.0
    %2032 = vmatprep.subr.mxu0 0.0
    %2033 = vmatpush1.msra.mxu0 0.0
    %2034 = vmatprep.subr.mxu0 0.0
    %2035 = vmatpush1.msra.mxu0 0.0
    %2036 = vmatprep.subr.mxu0 0.0
    %2037 = vmatpush1.msra.mxu0 0.0
    %2038 = vmatprep.subr.mxu0 0.0
    %2039 = vmatpush1.msra.mxu0 0.0
    %2040 = vmatprep.subr.mxu0 0.0
    %2041 = vmatpush1.msra.mxu0 0.0
    %2042 = vmatprep.subr.mxu0 0.0
    %2043 = vmatpush1.msra.mxu0 0.0
    %2044 = vmatprep.subr.mxu0 0.0
    %2045 = vmatpush1.msra.mxu0 0.0
    %2046 = vmatprep.subr.mxu0 0.0
    %2047 = vmatpush1.msra.mxu0 0.0
    %2048 = vmatprep.subr.mxu0 0.0
    %2049 = vmatpush1.msra.mxu0 0.0
    %2050 = vmatprep.subr.mxu0 0.0
    %2051 = vmatpush1.msra.mxu0 0.0
    %2052 = vmatprep.subr.mxu0 0.0
    %2053 = vmatpush1.msra.mxu0 0.0
    %2054 = vmatprep.subr.mxu0 0.0
    %2055 = vmatpush1.msra.mxu0 0.0
    %2056 = vmatprep.subr.mxu0 0.0
    %2057 = vmatpush1.msra.mxu0 0.0
    %2058 = vmatprep.subr.mxu0 0.0
    %2059 = vmatpush1.msra.mxu0 0.0
    %2060 = vmatprep.subr.mxu0 0.0
    %2061 = vmatpush1.msra.mxu0 0.0
    %2062 = vmatprep.subr.mxu0 0.0
    %2063 = vmatpush1.msra.mxu0 0.0
    %2064 = vmatprep.subr.mxu0 0.0
    %2065 = vmatpush1.msra.mxu0 0.0
    %2066 = vmatprep.subr.mxu0 0.0
    %2067 = vmatpush1.msra.mxu0 0.0
    %2068 = vmatprep.mubr.f32.mxu0 0.0
    %2069 = vmatmul.mubr.f32.gmra.mrb[0].mxu0 %v1907
    %v2070 = vpop.f32.mrb[0].mxu0
    %v2071 = vadd.f32 %v388, %v2070
    %v2072 = vpop.f32.mrb[0].mxu0
    %2073 = vdwg.mxu0
    %2075 = vrot.lane.b32.xlu0 %v1903, 64
    %v2076 = vpop.permute.xlu0 %2075
    %v2077 = vsel %vm186, %v2076, 0
    %2079 = vmatprep.subr.mxu0 0.0
    %2080 = vmatpush1.msra.mxu0 %v40
    %2081 = vmatprep.subr.mxu0 0.0
    %2082 = vmatpush1.msra.mxu0 %v41
    %2083 = vmatprep.subr.mxu0 0.0
    %2084 = vmatpush1.msra.mxu0 %v42
    %2085 = vmatprep.subr.mxu0 0.0
    %2086 = vmatpush1.msra.mxu0 %v43
    %2087 = vmatprep.subr.mxu0 0.0
    %2088 = vmatpush1.msra.mxu0 0.0
    %2089 = vmatprep.subr.mxu0 0.0
    %2090 = vmatpush1.msra.mxu0 0.0
    %2091 = vmatprep.subr.mxu0 0.0
    %2092 = vmatpush1.msra.mxu0 0.0
    %2093 = vmatprep.subr.mxu0 0.0
    %2094 = vmatpush1.msra.mxu0 0.0
    %2095 = vmatprep.subr.mxu0 0.0
    %2096 = vmatpush1.msra.mxu0 0.0
    %2097 = vmatprep.subr.mxu0 0.0
    %2098 = vmatpush1.msra.mxu0 0.0
    %2099 = vmatprep.subr.mxu0 0.0
    %2100 = vmatpush1.msra.mxu0 0.0
    %2101 = vmatprep.subr.mxu0 0.0
    %2102 = vmatpush1.msra.mxu0 0.0
    %2103 = vmatprep.subr.mxu0 0.0
    %2104 = vmatpush1.msra.mxu0 0.0
    %2105 = vmatprep.subr.mxu0 0.0
    %2106 = vmatpush1.msra.mxu0 0.0
    %2107 = vmatprep.subr.mxu0 0.0
    %2108 = vmatpush1.msra.mxu0 0.0
    %2109 = vmatprep.subr.mxu0 0.0
    %2110 = vmatpush1.msra.mxu0 0.0
    %2111 = vmatprep.subr.mxu0 0.0
    %2112 = vmatpush1.msra.mxu0 0.0
    %2113 = vmatprep.subr.mxu0 0.0
    %2114 = vmatpush1.msra.mxu0 0.0
    %2115 = vmatprep.subr.mxu0 0.0
    %2116 = vmatpush1.msra.mxu0 0.0
    %2117 = vmatprep.subr.mxu0 0.0
    %2118 = vmatpush1.msra.mxu0 0.0
    %2119 = vmatprep.subr.mxu0 0.0
    %2120 = vmatpush1.msra.mxu0 0.0
    %2121 = vmatprep.subr.mxu0 0.0
    %2122 = vmatpush1.msra.mxu0 0.0
    %2123 = vmatprep.subr.mxu0 0.0
    %2124 = vmatpush1.msra.mxu0 0.0
    %2125 = vmatprep.subr.mxu0 0.0
    %2126 = vmatpush1.msra.mxu0 0.0
    %2127 = vmatprep.subr.mxu0 0.0
    %2128 = vmatpush1.msra.mxu0 0.0
    %2129 = vmatprep.subr.mxu0 0.0
    %2130 = vmatpush1.msra.mxu0 0.0
    %2131 = vmatprep.subr.mxu0 0.0
    %2132 = vmatpush1.msra.mxu0 0.0
    %2133 = vmatprep.subr.mxu0 0.0
    %2134 = vmatpush1.msra.mxu0 0.0
    %2135 = vmatprep.subr.mxu0 0.0
    %2136 = vmatpush1.msra.mxu0 0.0
    %2137 = vmatprep.subr.mxu0 0.0
    %2138 = vmatpush1.msra.mxu0 0.0
    %2139 = vmatprep.subr.mxu0 0.0
    %2140 = vmatpush1.msra.mxu0 0.0
    %2141 = vmatprep.subr.mxu0 0.0
    %2142 = vmatpush1.msra.mxu0 0.0
    %2143 = vmatprep.mubr.f32.mxu0 0.0
    %2144 = vmatmul.mubr.f32.gmra.mrb[0].mxu0 %v2077
    %v2145 = vpop.f32.mrb[0].mxu0
    %v2146 = vadd.f32 0.0, %v2145
    %v2147 = vpop.f32.mrb[0].mxu0
    %2148 = vdwg.mxu0
    %v2149 = vadd.f32 %v2071, %v2146
    %v2150 = vxor.u32 %v2149, 2147483648
    %v2151 = vmul.f32 %v2150, 1.442695
    %v2152 = vpow.pop %v2151
    %v2153 = vadd.f32 %v2152, 1.0
    %v2154 = vrcp.pop %v2153
    %v2155 = vmul.f32 1.0, %v2154
    %v2156 = vtanh.pop %v2149
    %v2157 = vmul.f32 %v2155, %v1897
    %2159 = vrot.lane.b32.xlu0 %v2156, 32
    %v2160 = vpop.permute.xlu0 %2159
    %v2162 = vmul.f32 %v2155, %v2160
    %2164 = vrot.lane.b32.xlu0 %v2162, 32
    %v2165 = vpop.permute.xlu0 %2164
    %v2167 = vadd.f32 %v2157, %v2165
    %v2168 = vtanh.pop %v2167
    %2170 = vrot.lane.b32.xlu0 %v2168, 32
    %v2171 = vpop.permute.xlu0 %2170
    %v2173 = vmul.f32 %v2155, %v2171
    %2175 = vrot.lane.b32.xlu0 %v2003, 64
    %v2176 = vpop.permute.xlu0 %2175
    %v2177 = vsel %vm186, %v2176, 0
    %2179 = vmatprep.subr.mxu0 0.0
    %2180 = vmatpush1.msra.mxu0 %v36
    %2181 = vmatprep.subr.mxu0 0.0
    %2182 = vmatpush1.msra.mxu0 %v37
    %2183 = vmatprep.subr.mxu0 0.0
    %2184 = vmatpush1.msra.mxu0 %v38
    %2185 = vmatprep.subr.mxu0 0.0
    %2186 = vmatpush1.msra.mxu0 %v39
    %2187 = vmatprep.subr.mxu0 0.0
    %2188 = vmatpush1.msra.mxu0 0.0
    %2189 = vmatprep.subr.mxu0 0.0
    %2190 = vmatpush1.msra.mxu0 0.0
    %2191 = vmatprep.subr.mxu0 0.0
    %2192 = vmatpush1.msra.mxu0 0.0
    %2193 = vmatprep.subr.mxu0 0.0
    %2194 = vmatpush1.msra.mxu0 0.0
    %2195 = vmatprep.subr.mxu0 0.0
    %2196 = vmatpush1.msra.mxu0 0.0
    %2197 = vmatprep.subr.mxu0 0.0
    %2198 = vmatpush1.msra.mxu0 0.0
    %2199 = vmatprep.subr.mxu0 0.0
    %2200 = vmatpush1.msra.mxu0 0.0
    %2201 = vmatprep.subr.mxu0 0.0
    %2202 = vmatpush1.msra.mxu0 0.0
    %2203 = vmatprep.subr.mxu0 0.0
    %2204 = vmatpush1.msra.mxu0 0.0
    %2205 = vmatprep.subr.mxu0 0.0
    %2206 = vmatpush1.msra.mxu0 0.0
    %2207 = vmatprep.subr.mxu0 0.0
    %2208 = vmatpush1.msra.mxu0 0.0
    %2209 = vmatprep.subr.mxu0 0.0
    %2210 = vmatpush1.msra.mxu0 0.0
    %2211 = vmatprep.subr.mxu0 0.0
    %2212 = vmatpush1.msra.mxu0 0.0
    %2213 = vmatprep.subr.mxu0 0.0
    %2214 = vmatpush1.msra.mxu0 0.0
    %2215 = vmatprep.subr.mxu0 0.0
    %2216 = vmatpush1.msra.mxu0 0.0
    %2217 = vmatprep.subr.mxu0 0.0
    %2218 = vmatpush1.msra.mxu0 0.0
    %2219 = vmatprep.subr.mxu0 0.0
    %2220 = vmatpush1.msra.mxu0 0.0
    %2221 = vmatprep.subr.mxu0 0.0
    %2222 = vmatpush1.msra.mxu0 0.0
    %2223 = vmatprep.subr.mxu0 0.0
    %2224 = vmatpush1.msra.mxu0 0.0
    %2225 = vmatprep.subr.mxu0 0.0
    %2226 = vmatpush1.msra.mxu0 0.0
    %2227 = vmatprep.subr.mxu0 0.0
    %2228 = vmatpush1.msra.mxu0 0.0
    %2229 = vmatprep.subr.mxu0 0.0
    %2230 = vmatpush1.msra.mxu0 0.0
    %2231 = vmatprep.subr.mxu0 0.0
    %2232 = vmatpush1.msra.mxu0 0.0
    %2233 = vmatprep.subr.mxu0 0.0
    %2234 = vmatpush1.msra.mxu0 0.0
    %2235 = vmatprep.subr.mxu0 0.0
    %2236 = vmatpush1.msra.mxu0 0.0
    %2237 = vmatprep.subr.mxu0 0.0
    %2238 = vmatpush1.msra.mxu0 0.0
    %2239 = vmatprep.subr.mxu0 0.0
    %2240 = vmatpush1.msra.mxu0 0.0
    %2241 = vmatprep.subr.mxu0 0.0
    %2242 = vmatpush1.msra.mxu0 0.0
    %2243 = vmatprep.mubr.f32.mxu0 0.0
    %2244 = vmatmul.mubr.f32.gmra.mrb[0].mxu0 %v2177
    %v2245 = vpop.f32.mrb[0].mxu0
    %v2246 = vadd.f32 %v388, %v2245
    %v2247 = vpop.f32.mrb[0].mxu0
    %2248 = vdwg.mxu0
    %2250 = vrot.lane.b32.xlu0 %v2173, 64
    %v2251 = vpop.permute.xlu0 %2250
    %v2252 = vsel %vm186, %v2251, 0
    %2254 = vmatprep.subr.mxu0 0.0
    %2255 = vmatpush1.msra.mxu0 %v40
    %2256 = vmatprep.subr.mxu0 0.0
    %2257 = vmatpush1.msra.mxu0 %v41
    %2258 = vmatprep.subr.mxu0 0.0
    %2259 = vmatpush1.msra.mxu0 %v42
    %2260 = vmatprep.subr.mxu0 0.0
    %2261 = vmatpush1.msra.mxu0 %v43
    %2262 = vmatprep.subr.mxu0 0.0
    %2263 = vmatpush1.msra.mxu0 0.0
    %2264 = vmatprep.subr.mxu0 0.0
    %2265 = vmatpush1.msra.mxu0 0.0
    %2266 = vmatprep.subr.mxu0 0.0
    %2267 = vmatpush1.msra.mxu0 0.0
    %2268 = vmatprep.subr.mxu0 0.0
    %2269 = vmatpush1.msra.mxu0 0.0
    %2270 = vmatprep.subr.mxu0 0.0
    %2271 = vmatpush1.msra.mxu0 0.0
    %2272 = vmatprep.subr.mxu0 0.0
    %2273 = vmatpush1.msra.mxu0 0.0
    %2274 = vmatprep.subr.mxu0 0.0
    %2275 = vmatpush1.msra.mxu0 0.0
    %2276 = vmatprep.subr.mxu0 0.0
    %2277 = vmatpush1.msra.mxu0 0.0
    %2278 = vmatprep.subr.mxu0 0.0
    %2279 = vmatpush1.msra.mxu0 0.0
    %2280 = vmatprep.subr.mxu0 0.0
    %2281 = vmatpush1.msra.mxu0 0.0
    %2282 = vmatprep.subr.mxu0 0.0
    %2283 = vmatpush1.msra.mxu0 0.0
    %2284 = vmatprep.subr.mxu0 0.0
    %2285 = vmatpush1.msra.mxu0 0.0
    %2286 = vmatprep.subr.mxu0 0.0
    %2287 = vmatpush1.msra.mxu0 0.0
    %2288 = vmatprep.subr.mxu0 0.0
    %2289 = vmatpush1.msra.mxu0 0.0
    %2290 = vmatprep.subr.mxu0 0.0
    %2291 = vmatpush1.msra.mxu0 0.0
    %2292 = vmatprep.subr.mxu0 0.0
    %2293 = vmatpush1.msra.mxu0 0.0
    %2294 = vmatprep.subr.mxu0 0.0
    %2295 = vmatpush1.msra.mxu0 0.0
    %2296 = vmatprep.subr.mxu0 0.0
    %2297 = vmatpush1.msra.mxu0 0.0
    %2298 = vmatprep.subr.mxu0 0.0
    %2299 = vmatpush1.msra.mxu0 0.0
    %2300 = vmatprep.subr.mxu0 0.0
    %2301 = vmatpush1.msra.mxu0 0.0
    %2302 = vmatprep.subr.mxu0 0.0
    %2303 = vmatpush1.msra.mxu0 0.0
    %2304 = vmatprep.subr.mxu0 0.0
    %2305 = vmatpush1.msra.mxu0 0.0
    %2306 = vmatprep.subr.mxu0 0.0
    %2307 = vmatpush1.msra.mxu0 0.0
    %2308 = vmatprep.subr.mxu0 0.0
    %2309 = vmatpush1.msra.mxu0 0.0
    %2310 = vmatprep.subr.mxu0 0.0
    %2311 = vmatpush1.msra.mxu0 0.0
    %2312 = vmatprep.subr.mxu0 0.0
    %2313 = vmatpush1.msra.mxu0 0.0
    %2314 = vmatprep.subr.mxu0 0.0
    %2315 = vmatpush1.msra.mxu0 0.0
    %2316 = vmatprep.subr.mxu0 0.0
    %2317 = vmatpush1.msra.mxu0 0.0
    %2318 = vmatprep.mubr.f32.mxu0 0.0
    %2319 = vmatmul.mubr.f32.gmra.mrb[0].mxu0 %v2252
    %v2320 = vpop.f32.mrb[0].mxu0
    %v2321 = vadd.f32 0.0, %v2320
    %v2322 = vpop.f32.mrb[0].mxu0
    %2323 = vdwg.mxu0
    %v2324 = vadd.f32 %v2246, %v2321
    %v2325 = vxor.u32 %v2324, 2147483648
    %v2326 = vmul.f32 %v2325, 1.442695
    %v2327 = vpow.pop %v2326
    %v2328 = vadd.f32 %v2327, 1.0
    %v2329 = vrcp.pop %v2328
    %v2330 = vmul.f32 1.0, %v2329
    %v2331 = vtanh.pop %v2324
    %v2332 = vmul.f32 %v2330, %v2167
    %2334 = vrot.lane.b32.xlu0 %v2331, 32
    %v2335 = vpop.permute.xlu0 %2334
    %v2337 = vmul.f32 %v2330, %v2335
    %2339 = vrot.lane.b32.xlu0 %v2337, 32
    %v2340 = vpop.permute.xlu0 %2339
    %v2342 = vadd.f32 %v2332, %v2340
    %v2343 = vtanh.pop %v2342
    %2345 = vrot.lane.b32.xlu0 %v2343, 32
    %v2346 = vpop.permute.xlu0 %2345
    %v2348 = vmul.f32 %v2330, %v2346
    %2350 = vrot.lane.b32.xlu0 %v2348, 64
    %v2351 = vpop.permute.xlu0 %2350
    %2353 = vst.msk [vmem:[#allocation5] sm:$0xff] %vm186, %v2351
    // Predicated region
    $region18: #{tpu_custom_call.1} parent=1 // pred_check
      _
    $region19: #{tpu_custom_call.1} parent=1 // pred_check_branch
      %2355 = sbr.rel (0) target = $region21
    $region20: #{tpu_custom_call.1} parent=1 // pred_region
      %s2357 = ssub.s32 128, 128
      %2358 = vsyncadd [#allocation4], %s2357
      %s2360 = sshll.u32 [#allocation5], 4
      %s2361 = int_to_ptr.vmem [resolvable:$true] %s2360
      %2363 = dma.vmem_to_hbm [thread:$0]  %s2361, 128, %s3, [#allocation4]
    $region21: #{tpu_custom_call.1} parent=1 // pred_fallthru
      _
    // Predicated region
    $region22: #{tpu_custom_call.1} parent=1 // pred_check
      _
    $region23: #{tpu_custom_call.1} parent=1 // pred_check_branch
      %2365 = sbr.rel (0) target = $region25
    $region24: #{tpu_custom_call.1} parent=1 // pred_region
      %2366 = dma.done [#allocation4], 128
    $region25: #{tpu_custom_call.1} parent=1 // pred_fallthru
      _
    %2367 = vsyncpa [#allocation3], 1
    %2368 = vsyncpa [#allocation4], 1

</llo_original>
